<compile_context>
chip_gen: v5e
topology: v5e:2x2
jax: 0.10.0
libtpu: 0.0.40
codegen_flags: <defaults>
</compile_context>

<pallas_src>
import jax
import jax.numpy as jnp
import numpy as np
from jax.experimental import pallas as pl
from jax.experimental.pallas import tpu as pltpu


# ----------------------------------------------------------------------------
# Fused Conv2d(5x5, VALID) + bias + ReLU + MaxPool2x2 kernel
# ----------------------------------------------------------------------------
def _conv_relu_pool_kernel(x_ref, w_ref, b_ref, o_ref):
    """x_ref: (4, K, L)   per-pool-offset im2col operand (K = 25*Cin, L = Bt*Mp)
       w_ref: (Cout, K)   lane-dense conv weights
       b_ref: (Cout, 1)
       o_ref: (Cout, L)   pooled, ReLU'd conv output."""
    w = w_ref[...]
    # One MXU matmul per 2x2 pooling offset; elementwise max over the 4
    # offsets IS the max-pool (no un-pooled activation ever leaves VMEM).
    y = jnp.dot(w, x_ref[0], preferred_element_type=jnp.float32)
    for off in range(1, 4):
        y = jnp.maximum(
            y, jnp.dot(w, x_ref[off], preferred_element_type=jnp.float32))
    # relu / per-channel bias / max-pool commute:
    #   max_o(relu(conv_o + b)) == relu(max_o(conv_o) + b)
    o_ref[...] = jnp.maximum(y + b_ref[...], 0.0)


def _pick_batch_tile(n, mp, max_images=16):
    """Largest batch tile (<= max_images) whose folded lane width keeps the
    BlockSpec legal: either the block covers the full array, or its lane
    width is a multiple of 128."""
    if n <= max_images:
        return n
    for bt in range(max_images, 0, -1):
        if n % bt == 0 and (bt * mp) % 128 == 0:
            return bt
    return n  # whole batch in one step (raise vmem_limit_bytes if huge)


def conv_relu_pool_pallas(x_off, w, b, *, n, mp):
    """x_off: (4, K, N*Mp); w: (Cout, K); b: (Cout, 1) -> (Cout, N*Mp)."""
    noff, k, ltot = x_off.shape
    cout = w.shape[0]
    bt = _pick_batch_tile(n, mp)
    lt = bt * mp
    return pl.pallas_call(
        _conv_relu_pool_kernel,
        out_shape=jax.ShapeDtypeStruct((cout, ltot), jnp.float32),
        grid=(ltot // lt,),
        in_specs=[
            pl.BlockSpec((noff, k, lt), lambda i: (0, 0, i)),
            pl.BlockSpec((cout, k), lambda i: (0, 0)),
            pl.BlockSpec((cout, 1), lambda i: (0, 0)),
        ],
        out_specs=pl.BlockSpec((cout, lt), lambda i: (0, i)),
        compiler_params=pltpu.CompilerParams(
            dimension_semantics=("parallel",)),
    )(x_off, w, b)


# ----------------------------------------------------------------------------
# Fused fc1 + ReLU + fc2 + ReLU + fc3 kernel (fc3 padded to 128 lanes)
# ----------------------------------------------------------------------------
def _mlp_kernel(x_ref, w1_ref, b1_ref, w2_ref, b2_ref, w3_ref, b3_ref, o_ref):
    h = jnp.dot(x_ref[...], w1_ref[...],
                preferred_element_type=jnp.float32) + b1_ref[...]
    h = jnp.maximum(h, 0.0)
    h = jnp.dot(h, w2_ref[...],
                preferred_element_type=jnp.float32) + b2_ref[...]
    h = jnp.maximum(h, 0.0)
    o_ref[...] = jnp.dot(h, w3_ref[...],
                         preferred_element_type=jnp.float32) + b3_ref[...]


def mlp_pallas(x, w1, b1, w2, b2, w3, b3):
    """x: (N, K); w*: (K_in, K_out) pre-transposed; b*: (1, K_out)."""
    n, k = x.shape
    f1, f2, f3 = w1.shape[1], w2.shape[1], w3.shape[1]
    bm = n if n <= 256 else 256      # row tile; ~0.5 MB of weights stay resident
    return pl.pallas_call(
        _mlp_kernel,
        out_shape=jax.ShapeDtypeStruct((n, f3), jnp.float32),
        grid=(pl.cdiv(n, bm),),
        in_specs=[
            pl.BlockSpec((bm, k), lambda i: (i, 0)),
            pl.BlockSpec((k, f1), lambda i: (0, 0)),
            pl.BlockSpec((1, f1), lambda i: (0, 0)),
            pl.BlockSpec((f1, f2), lambda i: (0, 0)),
            pl.BlockSpec((1, f2), lambda i: (0, 0)),
            pl.BlockSpec((f2, f3), lambda i: (0, 0)),
            pl.BlockSpec((1, f3), lambda i: (0, 0)),
        ],
        out_specs=pl.BlockSpec((bm, f3), lambda i: (i, 0)),
        compiler_params=pltpu.CompilerParams(
            dimension_semantics=("parallel",)),
    )(x, w1, b1, w2, b2, w3, b3)


# ----------------------------------------------------------------------------
# Plain-JAX glue: per-pooling-offset im2col with batch folded into lanes
# ----------------------------------------------------------------------------
def _pool_offset_im2col(x, kh, kw):
    """x: (N, C, H, W) -> ((4, C*kh*kw, N*Hp*Wp), (Hp, Wp)).

    For offset (dh, dw): row c*kh*kw + i*kw + j, lane b*Hp*Wp + hp*Wp + wp
    holds x[b, c, 2*hp + dh + i, 2*wp + dw + j]  (VALID conv + 2x2/2 max-pool
    geometry; Hp = (H - kh + 1) // 2).
    """
    n, c, h, w = x.shape
    hp, wp = (h - kh + 1) // 2, (w - kw + 1) // 2
    offs = []
    for dh in range(2):
        for dw in range(2):
            taps = [
                x[:, :, dh + i:dh + i + 2 * hp - 1:2,
                        dw + j:dw + j + 2 * wp - 1:2]         # (N, C, Hp, Wp)
                for i in range(kh) for j in range(kw)
            ]
            t = jnp.stack(taps, axis=2)                        # (N, C, 25, Hp, Wp)
            t = t.reshape(n, c * kh * kw, hp * wp)             # rows = (c, i, j)
            offs.append(
                jnp.transpose(t, (1, 0, 2)).reshape(c * kh * kw, n * hp * wp))
    return jnp.stack(offs, axis=0), (hp, wp)


# ----------------------------------------------------------------------------
# Parameters: PyTorch-layout init + one-time kernel-layout preparation
# ----------------------------------------------------------------------------
def init_lenet_params(key):
    ks = jax.random.split(key, 10)
    s = 0.05
    return {
        "conv1_w": s * jax.random.normal(ks[0], (16, 3, 5, 5), jnp.float32),
        "conv1_b": s * jax.random.normal(ks[1], (16,), jnp.float32),
        "conv2_w": s * jax.random.normal(ks[2], (32, 16, 5, 5), jnp.float32),
        "conv2_b": s * jax.random.normal(ks[3], (32,), jnp.float32),
        "fc1_w": s * jax.random.normal(ks[4], (120, 32 * 5 * 5), jnp.float32),
        "fc1_b": s * jax.random.normal(ks[5], (120,), jnp.float32),
        "fc2_w": s * jax.random.normal(ks[6], (84, 120), jnp.float32),
        "fc2_b": s * jax.random.normal(ks[7], (84,), jnp.float32),
        "fc3_w": s * jax.random.normal(ks[8], (10, 84), jnp.float32),
        "fc3_b": s * jax.random.normal(ks[9], (10,), jnp.float32),
    }


def prepare_params(params):
    """One-time re-layout of PyTorch-convention params for the kernels."""
    def conv_w(w):                        # (Cout, Cin, kh, kw) -> (Cout, Cin*kh*kw)
        return w.reshape(w.shape[0], -1)  # column ordering (c, i, j) matches im2col

    f3_pad = 128                          # lane-dense fc3 output
    w3 = params["fc3_w"].T                                   # (84, 10)
    w3 = jnp.pad(w3, ((0, 0), (0, f3_pad - w3.shape[1])))
    b3 = jnp.pad(params["fc3_b"].reshape(1, -1),
                 ((0, 0), (0, f3_pad - params["fc3_b"].shape[0])))
    return {
        "conv1_w": conv_w(params["conv1_w"]),
        "conv1_b": params["conv1_b"].reshape(-1, 1),
        "conv2_w": conv_w(params["conv2_w"]),
        "conv2_b": params["conv2_b"].reshape(-1, 1),
        "fc1_w": params["fc1_w"].T, "fc1_b": params["fc1_b"].reshape(1, -1),
        "fc2_w": params["fc2_w"].T, "fc2_b": params["fc2_b"].reshape(1, -1),
        "fc3_w": w3, "fc3_b": b3,
    }


# ----------------------------------------------------------------------------
# Forward pass (3 pallas_calls total)
# ----------------------------------------------------------------------------
def lenet_forward(prepared, x):
    # x: (N, 3, 32, 32) NCHW float32
    n = x.shape[0]
    kh = kw = 5

    # conv1 + bias + ReLU + pool1 (one fused kernel, 4 matmuls per tile)
    x1, (hp1, wp1) = _pool_offset_im2col(x, kh, kw)            # (4, 75, N*196)
    y1 = conv_relu_pool_pallas(x1, prepared["conv1_w"], prepared["conv1_b"],
                               n=n, mp=hp1 * wp1)              # (16, N*196)
    y1 = jnp.transpose(y1.reshape(16, n, hp1, wp1), (1, 0, 2, 3))  # (N,16,14,14)

    # conv2 + bias + ReLU + pool2 (one fused kernel, 4 matmuls per tile)
    x2, (hp2, wp2) = _pool_offset_im2col(y1, kh, kw)           # (4, 400, N*25)
    y2 = conv_relu_pool_pallas(x2, prepared["conv2_w"], prepared["conv2_b"],
                               n=n, mp=hp2 * wp2)              # (32, N*25)

    # flatten to PyTorch .view(-1, 800) order: feat[b, c*25 + m]
    feat = jnp.transpose(y2.reshape(32, n, hp2 * wp2), (1, 0, 2)).reshape(n, -1)

    # fc1 + ReLU + fc2 + ReLU + fc3 (one fused kernel, lane-padded output)
    logits = mlp_pallas(feat,
                        prepared["fc1_w"], prepared["fc1_b"],
                        prepared["fc2_w"], prepared["fc2_b"],
                        prepared["fc3_w"], prepared["fc3_b"])  # (N, 128)
    return logits[:, :10]


# ----------------------------------------------------------------------------
# Pure-JAX reference (PyTorch semantics) for the correctness check
# ----------------------------------------------------------------------------
def lenet_reference(params, x):
    def conv(x, w, b):
        y = jax.lax.conv_general_dilated(
            x, w, window_strides=(1, 1), padding="VALID",
            dimension_numbers=("NCHW", "OIHW", "NCHW"))
        return y + b[None, :, None, None]

    def pool(x):
        n, c, h, w = x.shape
        return x.reshape(n, c, h // 2, 2, w // 2, 2).max(axis=(3, 5))

    x = jax.nn.relu(conv(x, params["conv1_w"], params["conv1_b"]))
    x = pool(x)
    x = jax.nn.relu(conv(x, params["conv2_w"], params["conv2_b"]))
    x = pool(x)
    x = x.reshape(x.shape[0], 32 * 5 * 5)
    x = jax.nn.relu(x @ params["fc1_w"].T + params["fc1_b"])
    x = jax.nn.relu(x @ params["fc2_w"].T + params["fc2_b"])
    return x @ params["fc3_w"].T + params["fc3_b"]


if __name__ == "__main__":
    key = jax.random.PRNGKey(0)
    pkey, xkey = jax.random.split(key)
    params = init_lenet_params(pkey)
    prepared = prepare_params(params)          # one-time layout prep
    # LeNet's flatten (32*5*5) requires 32x32 spatial input.
    x = jax.random.normal(xkey, (2, 3, 32, 32), jnp.float32)

    out = jax.block_until_ready(jax.jit(lenet_forward)(prepared, x))
    ref = jax.block_until_ready(lenet_reference(params, x))

    assert out.shape == (2, 10), out.shape
    np.testing.assert_allclose(np.asarray(out), np.asarray(ref),
                               rtol=1e-3, atol=1e-3)
    print("KERNEL_OK")
</pallas_src>

<mosaic_0001>
module attributes {stable_mosaic.version = 11 : i64} {
  func.func @_conv_relu_pool_kernel(%arg0: i32, %arg1: memref<4x75x392xf32, #tpu.memory_space<vmem>>, %arg2: memref<16x75xf32, #tpu.memory_space<vmem>>, %arg3: memref<16x1xf32, #tpu.memory_space<vmem>>, %arg4: memref<16x392xf32, #tpu.memory_space<vmem>>) attributes {dimension_semantics = [#tpu.dimension_semantics<parallel>], iteration_bounds = array<i64: 1>, scalar_prefetch = 0 : i64, scratch_operands = 0 : i64, tpu.core_type = #tpu.core_type<tc>, window_params = [{transform_indices = @transform_0, window_bounds = array<i64: 4, 75, 392>}, {pipeline_mode = #tpu.pipeline_mode<synchronous>, transform_indices = @transform_1, window_bounds = array<i64: 16, 75>}, {pipeline_mode = #tpu.pipeline_mode<synchronous>, transform_indices = @transform_2, window_bounds = array<i64: 16, 1>}, {transform_indices = @transform_3, window_bounds = array<i64: 16, 392>}]} {
    %c0 = arith.constant 0 : index
    %c0_0 = arith.constant 0 : index
    %0 = vector.load %arg2[%c0, %c0_0] : memref<16x75xf32, #tpu.memory_space<vmem>>, vector<16x75xf32>
    %c0_1 = arith.constant 0 : index
    %c0_2 = arith.constant 0 : index
    %c0_3 = arith.constant 0 : index
    %1 = vector.load %arg1[%c0_1, %c0_2, %c0_3] : memref<4x75x392xf32, #tpu.memory_space<vmem>>, vector<1x75x392xf32>
    %2 = vector.shape_cast %1 : vector<1x75x392xf32> to vector<75x392xf32>
    %cst = arith.constant dense<0.000000e+00> : vector<16x392xf32>
    %3 = tpu.matmul %0, %2, %cst {dimension_numbers = #tpu.dot_dimension_numbers<[1], [0], [0], [1], [0, 0, 1, 1], [], []>} : vector<16x75xf32>, vector<75x392xf32>, vector<16x392xf32> -> vector<16x392xf32>
    %c1 = arith.constant 1 : index
    %c0_4 = arith.constant 0 : index
    %c0_5 = arith.constant 0 : index
    %4 = vector.load %arg1[%c1, %c0_4, %c0_5] : memref<4x75x392xf32, #tpu.memory_space<vmem>>, vector<1x75x392xf32>
    %5 = vector.shape_cast %4 : vector<1x75x392xf32> to vector<75x392xf32>
    %cst_6 = arith.constant dense<0.000000e+00> : vector<16x392xf32>
    %6 = tpu.matmul %0, %5, %cst_6 {dimension_numbers = #tpu.dot_dimension_numbers<[1], [0], [0], [1], [0, 0, 1, 1], [], []>} : vector<16x75xf32>, vector<75x392xf32>, vector<16x392xf32> -> vector<16x392xf32>
    %7 = arith.maximumf %3, %6 : vector<16x392xf32>
    %c2 = arith.constant 2 : index
    %c0_7 = arith.constant 0 : index
    %c0_8 = arith.constant 0 : index
    %8 = vector.load %arg1[%c2, %c0_7, %c0_8] : memref<4x75x392xf32, #tpu.memory_space<vmem>>, vector<1x75x392xf32>
    %9 = vector.shape_cast %8 : vector<1x75x392xf32> to vector<75x392xf32>
    %cst_9 = arith.constant dense<0.000000e+00> : vector<16x392xf32>
    %10 = tpu.matmul %0, %9, %cst_9 {dimension_numbers = #tpu.dot_dimension_numbers<[1], [0], [0], [1], [0, 0, 1, 1], [], []>} : vector<16x75xf32>, vector<75x392xf32>, vector<16x392xf32> -> vector<16x392xf32>
    %11 = arith.maximumf %7, %10 : vector<16x392xf32>
    %c3 = arith.constant 3 : index
    %c0_10 = arith.constant 0 : index
    %c0_11 = arith.constant 0 : index
    %12 = vector.load %arg1[%c3, %c0_10, %c0_11] : memref<4x75x392xf32, #tpu.memory_space<vmem>>, vector<1x75x392xf32>
    %13 = vector.shape_cast %12 : vector<1x75x392xf32> to vector<75x392xf32>
    %cst_12 = arith.constant dense<0.000000e+00> : vector<16x392xf32>
    %14 = tpu.matmul %0, %13, %cst_12 {dimension_numbers = #tpu.dot_dimension_numbers<[1], [0], [0], [1], [0, 0, 1, 1], [], []>} : vector<16x75xf32>, vector<75x392xf32>, vector<16x392xf32> -> vector<16x392xf32>
    %15 = arith.maximumf %11, %14 : vector<16x392xf32>
    %c0_13 = arith.constant 0 : index
    %c0_14 = arith.constant 0 : index
    %16 = vector.load %arg3[%c0_13, %c0_14] : memref<16x1xf32, #tpu.memory_space<vmem>>, vector<16x1xf32>
    %17 = vector.broadcast %16 : vector<16x1xf32> to vector<16x392xf32>
    %18 = arith.addf %15, %17 : vector<16x392xf32>
    %cst_15 = arith.constant 0.000000e+00 : f32
    %19 = vector.broadcast %cst_15 : f32 to vector<16x392xf32>
    %20 = arith.maximumf %18, %19 : vector<16x392xf32>
    %c0_16 = arith.constant 0 : index
    %c0_17 = arith.constant 0 : index
    %21 = vector.load %arg4[%c0_16, %c0_17] : memref<16x392xf32, #tpu.memory_space<vmem>>, vector<16x392xf32>
    tpu.vector_store %arg4[%c0_16, %c0_17], %20 {strides = array<i32>} : memref<16x392xf32, #tpu.memory_space<vmem>>, vector<16x392xf32>,
    return
  }
  func.func @transform_0(%arg0: i32) -> (i32, i32, i32) {
    %c0_i32 = arith.constant 0 : i32
    %c0_i32_0 = arith.constant 0 : i32
    %c0_i32_1 = arith.constant 0 : i32
    return %c0_i32, %c0_i32_0, %arg0 : i32, i32, i32
  }
  func.func @transform_1(%arg0: i32) -> (i32, i32) {
    %c0_i32 = arith.constant 0 : i32
    %c0_i32_0 = arith.constant 0 : i32
    %c0_i32_1 = arith.constant 0 : i32
    return %c0_i32, %c0_i32_0 : i32, i32
  }
  func.func @transform_2(%arg0: i32) -> (i32, i32) {
    %c0_i32 = arith.constant 0 : i32
    %c0_i32_0 = arith.constant 0 : i32
    %c0_i32_1 = arith.constant 0 : i32
    return %c0_i32, %c0_i32_0 : i32, i32
  }
  func.func @transform_3(%arg0: i32) -> (i32, i32) {
    %c0_i32 = arith.constant 0 : i32
    %c0_i32_0 = arith.constant 0 : i32
    return %c0_i32, %arg0 : i32, i32
  }
}

module attributes {stable_mosaic.version = 11 : i64} {
  func.func @_conv_relu_pool_kernel(%arg0: i32, %arg1: memref<4x400x50xf32, #tpu.memory_space<vmem>>, %arg2: memref<32x400xf32, #tpu.memory_space<vmem>>, %arg3: memref<32x1xf32, #tpu.memory_space<vmem>>, %arg4: memref<32x50xf32, #tpu.memory_space<vmem>>) attributes {dimension_semantics = [#tpu.dimension_semantics<parallel>], iteration_bounds = array<i64: 1>, scalar_prefetch = 0 : i64, scratch_operands = 0 : i64, tpu.core_type = #tpu.core_type<tc>, window_params = [{transform_indices = @transform_0, window_bounds = array<i64: 4, 400, 50>}, {pipeline_mode = #tpu.pipeline_mode<synchronous>, transform_indices = @transform_1, window_bounds = array<i64: 32, 400>}, {pipeline_mode = #tpu.pipeline_mode<synchronous>, transform_indices = @transform_2, window_bounds = array<i64: 32, 1>}, {transform_indices = @transform_3, window_bounds = array<i64: 32, 50>}]} {
    %c0 = arith.constant 0 : index
    %c0_0 = arith.constant 0 : index
    %0 = vector.load %arg2[%c0, %c0_0] : memref<32x400xf32, #tpu.memory_space<vmem>>, vector<32x400xf32>
    %c0_1 = arith.constant 0 : index
    %c0_2 = arith.constant 0 : index
    %c0_3 = arith.constant 0 : index
    %1 = vector.load %arg1[%c0_1, %c0_2, %c0_3] : memref<4x400x50xf32, #tpu.memory_space<vmem>>, vector<1x400x50xf32>
    %2 = vector.shape_cast %1 : vector<1x400x50xf32> to vector<400x50xf32>
    %cst = arith.constant dense<0.000000e+00> : vector<32x50xf32>
    %3 = tpu.matmul %0, %2, %cst {dimension_numbers = #tpu.dot_dimension_numbers<[1], [0], [0], [1], [0, 0, 1, 1], [], []>} : vector<32x400xf32>, vector<400x50xf32>, vector<32x50xf32> -> vector<32x50xf32>
    %c1 = arith.constant 1 : index
    %c0_4 = arith.constant 0 : index
    %c0_5 = arith.constant 0 : index
    %4 = vector.load %arg1[%c1, %c0_4, %c0_5] : memref<4x400x50xf32, #tpu.memory_space<vmem>>, vector<1x400x50xf32>
    %5 = vector.shape_cast %4 : vector<1x400x50xf32> to vector<400x50xf32>
    %cst_6 = arith.constant dense<0.000000e+00> : vector<32x50xf32>
    %6 = tpu.matmul %0, %5, %cst_6 {dimension_numbers = #tpu.dot_dimension_numbers<[1], [0], [0], [1], [0, 0, 1, 1], [], []>} : vector<32x400xf32>, vector<400x50xf32>, vector<32x50xf32> -> vector<32x50xf32>
    %7 = arith.maximumf %3, %6 : vector<32x50xf32>
    %c2 = arith.constant 2 : index
    %c0_7 = arith.constant 0 : index
    %c0_8 = arith.constant 0 : index
    %8 = vector.load %arg1[%c2, %c0_7, %c0_8] : memref<4x400x50xf32, #tpu.memory_space<vmem>>, vector<1x400x50xf32>
    %9 = vector.shape_cast %8 : vector<1x400x50xf32> to vector<400x50xf32>
    %cst_9 = arith.constant dense<0.000000e+00> : vector<32x50xf32>
    %10 = tpu.matmul %0, %9, %cst_9 {dimension_numbers = #tpu.dot_dimension_numbers<[1], [0], [0], [1], [0, 0, 1, 1], [], []>} : vector<32x400xf32>, vector<400x50xf32>, vector<32x50xf32> -> vector<32x50xf32>
    %11 = arith.maximumf %7, %10 : vector<32x50xf32>
    %c3 = arith.constant 3 : index
    %c0_10 = arith.constant 0 : index
    %c0_11 = arith.constant 0 : index
    %12 = vector.load %arg1[%c3, %c0_10, %c0_11] : memref<4x400x50xf32, #tpu.memory_space<vmem>>, vector<1x400x50xf32>
    %13 = vector.shape_cast %12 : vector<1x400x50xf32> to vector<400x50xf32>
    %cst_12 = arith.constant dense<0.000000e+00> : vector<32x50xf32>
    %14 = tpu.matmul %0, %13, %cst_12 {dimension_numbers = #tpu.dot_dimension_numbers<[1], [0], [0], [1], [0, 0, 1, 1], [], []>} : vector<32x400xf32>, vector<400x50xf32>, vector<32x50xf32> -> vector<32x50xf32>
    %15 = arith.maximumf %11, %14 : vector<32x50xf32>
    %c0_13 = arith.constant 0 : index
    %c0_14 = arith.constant 0 : index
    %16 = vector.load %arg3[%c0_13, %c0_14] : memref<32x1xf32, #tpu.memory_space<vmem>>, vector<32x1xf32>
    %17 = vector.broadcast %16 : vector<32x1xf32> to vector<32x50xf32>
    %18 = arith.addf %15, %17 : vector<32x50xf32>
    %cst_15 = arith.constant 0.000000e+00 : f32
    %19 = vector.broadcast %cst_15 : f32 to vector<32x50xf32>
    %20 = arith.maximumf %18, %19 : vector<32x50xf32>
    %c0_16 = arith.constant 0 : index
    %c0_17 = arith.constant 0 : index
    %21 = vector.load %arg4[%c0_16, %c0_17] : memref<32x50xf32, #tpu.memory_space<vmem>>, vector<32x50xf32>
    tpu.vector_store %arg4[%c0_16, %c0_17], %20 {strides = array<i32>} : memref<32x50xf32, #tpu.memory_space<vmem>>, vector<32x50xf32>,
    return
  }
  func.func @transform_0(%arg0: i32) -> (i32, i32, i32) {
    %c0_i32 = arith.constant 0 : i32
    %c0_i32_0 = arith.constant 0 : i32
    %c0_i32_1 = arith.constant 0 : i32
    return %c0_i32, %c0_i32_0, %arg0 : i32, i32, i32
  }
  func.func @transform_1(%arg0: i32) -> (i32, i32) {
    %c0_i32 = arith.constant 0 : i32
    %c0_i32_0 = arith.constant 0 : i32
    %c0_i32_1 = arith.constant 0 : i32
    return %c0_i32, %c0_i32_0 : i32, i32
  }
  func.func @transform_2(%arg0: i32) -> (i32, i32) {
    %c0_i32 = arith.constant 0 : i32
    %c0_i32_0 = arith.constant 0 : i32
    %c0_i32_1 = arith.constant 0 : i32
    return %c0_i32, %c0_i32_0 : i32, i32
  }
  func.func @transform_3(%arg0: i32) -> (i32, i32) {
    %c0_i32 = arith.constant 0 : i32
    %c0_i32_0 = arith.constant 0 : i32
    return %c0_i32, %arg0 : i32, i32
  }
}

module attributes {stable_mosaic.version = 11 : i64} {
  func.func @_mlp_kernel(%arg0: i32, %arg1: memref<2x800xf32, #tpu.memory_space<vmem>>, %arg2: memref<800x120xf32, #tpu.memory_space<vmem>>, %arg3: memref<1x120xf32, #tpu.memory_space<vmem>>, %arg4: memref<120x84xf32, #tpu.memory_space<vmem>>, %arg5: memref<1x84xf32, #tpu.memory_space<vmem>>, %arg6: memref<84x128xf32, #tpu.memory_space<vmem>>, %arg7: memref<1x128xf32, #tpu.memory_space<vmem>>, %arg8: memref<2x128xf32, #tpu.memory_space<vmem>>) attributes {dimension_semantics = [#tpu.dimension_semantics<parallel>], iteration_bounds = array<i64: 1>, scalar_prefetch = 0 : i64, scratch_operands = 0 : i64, tpu.core_type = #tpu.core_type<tc>, window_params = [{transform_indices = @transform_0, window_bounds = array<i64: 2, 800>}, {pipeline_mode = #tpu.pipeline_mode<synchronous>, transform_indices = @transform_1, window_bounds = array<i64: 800, 120>}, {pipeline_mode = #tpu.pipeline_mode<synchronous>, transform_indices = @transform_2, window_bounds = array<i64: 1, 120>}, {pipeline_mode = #tpu.pipeline_mode<synchronous>, transform_indices = @transform_3, window_bounds = array<i64: 120, 84>}, {pipeline_mode = #tpu.pipeline_mode<synchronous>, transform_indices = @transform_4, window_bounds = array<i64: 1, 84>}, {pipeline_mode = #tpu.pipeline_mode<synchronous>, transform_indices = @transform_5, window_bounds = array<i64: 84, 128>}, {pipeline_mode = #tpu.pipeline_mode<synchronous>, transform_indices = @transform_6, window_bounds = array<i64: 1, 128>}, {transform_indices = @transform_7, window_bounds = array<i64: 2, 128>}]} {
    %c0 = arith.constant 0 : index
    %c0_0 = arith.constant 0 : index
    %0 = vector.load %arg1[%c0, %c0_0] : memref<2x800xf32, #tpu.memory_space<vmem>>, vector<2x800xf32>
    %c0_1 = arith.constant 0 : index
    %c0_2 = arith.constant 0 : index
    %1 = vector.load %arg2[%c0_1, %c0_2] : memref<800x120xf32, #tpu.memory_space<vmem>>, vector<800x120xf32>
    %cst = arith.constant dense<0.000000e+00> : vector<2x120xf32>
    %2 = tpu.matmul %0, %1, %cst {dimension_numbers = #tpu.dot_dimension_numbers<[1], [0], [0], [1], [0, 0, 1, 1], [], []>} : vector<2x800xf32>, vector<800x120xf32>, vector<2x120xf32> -> vector<2x120xf32>
    %c0_3 = arith.constant 0 : index
    %c0_4 = arith.constant 0 : index
    %3 = vector.load %arg3[%c0_3, %c0_4] : memref<1x120xf32, #tpu.memory_space<vmem>>, vector<1x120xf32>
    %4 = vector.broadcast %3 : vector<1x120xf32> to vector<2x120xf32>
    %5 = arith.addf %2, %4 : vector<2x120xf32>
    %cst_5 = arith.constant 0.000000e+00 : f32
    %6 = vector.broadcast %cst_5 : f32 to vector<2x120xf32>
    %7 = arith.maximumf %5, %6 : vector<2x120xf32>
    %c0_6 = arith.constant 0 : index
    %c0_7 = arith.constant 0 : index
    %8 = vector.load %arg4[%c0_6, %c0_7] : memref<120x84xf32, #tpu.memory_space<vmem>>, vector<120x84xf32>
    %cst_8 = arith.constant dense<0.000000e+00> : vector<2x84xf32>
    %9 = tpu.matmul %7, %8, %cst_8 {dimension_numbers = #tpu.dot_dimension_numbers<[1], [0], [0], [1], [0, 0, 1, 1], [], []>} : vector<2x120xf32>, vector<120x84xf32>, vector<2x84xf32> -> vector<2x84xf32>
    %c0_9 = arith.constant 0 : index
    %c0_10 = arith.constant 0 : index
    %10 = vector.load %arg5[%c0_9, %c0_10] : memref<1x84xf32, #tpu.memory_space<vmem>>, vector<1x84xf32>
    %11 = vector.broadcast %10 : vector<1x84xf32> to vector<2x84xf32>
    %12 = arith.addf %9, %11 : vector<2x84xf32>
    %cst_11 = arith.constant 0.000000e+00 : f32
    %13 = vector.broadcast %cst_11 : f32 to vector<2x84xf32>
    %14 = arith.maximumf %12, %13 : vector<2x84xf32>
    %c0_12 = arith.constant 0 : index
    %c0_13 = arith.constant 0 : index
    %15 = vector.load %arg6[%c0_12, %c0_13] : memref<84x128xf32, #tpu.memory_space<vmem>>, vector<84x128xf32>
    %cst_14 = arith.constant dense<0.000000e+00> : vector<2x128xf32>
    %16 = tpu.matmul %14, %15, %cst_14 {dimension_numbers = #tpu.dot_dimension_numbers<[1], [0], [0], [1], [0, 0, 1, 1], [], []>} : vector<2x84xf32>, vector<84x128xf32>, vector<2x128xf32> -> vector<2x128xf32>
    %c0_15 = arith.constant 0 : index
    %c0_16 = arith.constant 0 : index
    %17 = vector.load %arg7[%c0_15, %c0_16] : memref<1x128xf32, #tpu.memory_space<vmem>>, vector<1x128xf32>
    %18 = vector.broadcast %17 : vector<1x128xf32> to vector<2x128xf32>
    %19 = arith.addf %16, %18 : vector<2x128xf32>
    %c0_17 = arith.constant 0 : index
    %c0_18 = arith.constant 0 : index
    %20 = vector.load %arg8[%c0_17, %c0_18] : memref<2x128xf32, #tpu.memory_space<vmem>>, vector<2x128xf32>
    tpu.vector_store %arg8[%c0_17, %c0_18], %19 {strides = array<i32>} : memref<2x128xf32, #tpu.memory_space<vmem>>, vector<2x128xf32>,
    return
  }
  func.func @transform_0(%arg0: i32) -> (i32, i32) {
    %c0_i32 = arith.constant 0 : i32
    %c0_i32_0 = arith.constant 0 : i32
    return %arg0, %c0_i32 : i32, i32
  }
  func.func @transform_1(%arg0: i32) -> (i32, i32) {
    %c0_i32 = arith.constant 0 : i32
    %c0_i32_0 = arith.constant 0 : i32
    %c0_i32_1 = arith.constant 0 : i32
    return %c0_i32, %c0_i32_0 : i32, i32
  }
  func.func @transform_2(%arg0: i32) -> (i32, i32) {
    %c0_i32 = arith.constant 0 : i32
    %c0_i32_0 = arith.constant 0 : i32
    %c0_i32_1 = arith.constant 0 : i32
    return %c0_i32, %c0_i32_0 : i32, i32
  }
  func.func @transform_3(%arg0: i32) -> (i32, i32) {
    %c0_i32 = arith.constant 0 : i32
    %c0_i32_0 = arith.constant 0 : i32
    %c0_i32_1 = arith.constant 0 : i32
    return %c0_i32, %c0_i32_0 : i32, i32
  }
  func.func @transform_4(%arg0: i32) -> (i32, i32) {
    %c0_i32 = arith.constant 0 : i32
    %c0_i32_0 = arith.constant 0 : i32
    %c0_i32_1 = arith.constant 0 : i32
    return %c0_i32, %c0_i32_0 : i32, i32
  }
  func.func @transform_5(%arg0: i32) -> (i32, i32) {
    %c0_i32 = arith.constant 0 : i32
    %c0_i32_0 = arith.constant 0 : i32
    %c0_i32_1 = arith.constant 0 : i32
    return %c0_i32, %c0_i32_0 : i32, i32
  }
  func.func @transform_6(%arg0: i32) -> (i32, i32) {
    %c0_i32 = arith.constant 0 : i32
    %c0_i32_0 = arith.constant 0 : i32
    %c0_i32_1 = arith.constant 0 : i32
    return %c0_i32, %c0_i32_0 : i32, i32
  }
  func.func @transform_7(%arg0: i32) -> (i32, i32) {
    %c0_i32 = arith.constant 0 : i32
    %c0_i32_0 = arith.constant 0 : i32
    return %arg0, %c0_i32 : i32, i32
  }
}

</mosaic_0001>

<llo_original>
// kernel: lenet_forward.3
$region0: #{lenet_forward.3}
  #allocation0 [shape = 'u32[]', space=smem, size = 0x4, offset = 0x4, fixed_abs, tag = 'smem constant byte address 0x4 - core index']
  #allocation1 [shape = 'u32[72,128]{1,0:T(1,128)}', space=vmem, size = 0x9000, scoped, tag = 'internal scratch']
  %s0 = inlined_call_operand.vmem [shape: f32[4,75,392], index: 0, kind: input, shape index: {}]
  %s1 = inlined_call_operand.vmem [shape: f32[16,75], index: 1, kind: input, shape index: {}]
  %s2 = inlined_call_operand.vmem [shape: f32[16,1], index: 2, kind: input, shape index: {}]
  %s3 = inlined_call_operand.vmem [shape: f32[16,392], index: 3, kind: output, shape index: {}]
  %s4 = sld [smem:[#allocation0]]
  $region22: #{lenet_forward.3} parent=0
    _
  %s6 = ssub.s32 1, %s4
  %s7 = scalar_select 0, %s6, %s4
  // Predicated region
  $region2: #{lenet_forward.3} parent=0 // pred_check
    _
  $region3: #{lenet_forward.3} parent=0 // pred_check_branch
    %9 = sbr.rel (0) target = $region5
  $region4: #{lenet_forward.3} parent=0 // pred_region
    _
  $region5: #{lenet_forward.3} parent=0 // pred_fallthru
    _
  // Predicated region
  $region6: #{lenet_forward.3} parent=0 // pred_check
    _
  $region7: #{lenet_forward.3} parent=0 // pred_check_branch
    %11 = sbr.rel (0) target = $region9
  $region8: #{lenet_forward.3} parent=0 // pred_region
    _
  $region9: #{lenet_forward.3} parent=0 // pred_fallthru
    _
  // Predicated region
  $region10: #{lenet_forward.3} parent=0 // pred_check
    _
  $region11: #{lenet_forward.3} parent=0 // pred_check_branch
    %13 = sbr.rel (0) target = $region13
  $region12: #{lenet_forward.3} parent=0 // pred_region
    _
  $region13: #{lenet_forward.3} parent=0 // pred_fallthru
    _
  %v14 = vld [vmem:[%s1] sm:$0xff]
  %v15 = vld [vmem:[%s1 + $0x8] sm:$0xff]
  %v16 = vld [vmem:[%s0] sm:$0xff]
  %v17 = vld [vmem:[%s0 + $0x8] sm:$0xff]
  %v18 = vld [vmem:[%s0 + $0x10] sm:$0xff]
  %v19 = vld [vmem:[%s0 + $0x18] sm:$0xff]
  %v20 = vld [vmem:[%s0 + $0x20] sm:$0xff]
  %v21 = vld [vmem:[%s0 + $0x28] sm:$0xff]
  %v22 = vld [vmem:[%s0 + $0x30] sm:$0xff]
  %v23 = vld [vmem:[%s0 + $0x38] sm:$0xff]
  %v24 = vld [vmem:[%s0 + $0x40] sm:$0xff]
  %v25 = vld [vmem:[%s0 + $0x48] sm:$0xff]
  %v26 = vld [vmem:[%s0 + $0x50] sm:$0xff]
  %v27 = vld [vmem:[%s0 + $0x58] sm:$0xff]
  %v28 = vld [vmem:[%s0 + $0x60] sm:$0xff]
  %v29 = vld [vmem:[%s0 + $0x68] sm:$0xff]
  %v30 = vld [vmem:[%s0 + $0x70] sm:$0xff]
  %v31 = vld [vmem:[%s0 + $0x78] sm:$0xff]
  %v32 = vld [vmem:[%s0 + $0x80] sm:$0xff]
  %v33 = vld [vmem:[%s0 + $0x88] sm:$0xff]
  %v34 = vld [vmem:[%s0 + $0x90] sm:$0xff]
  %v35 = vld [vmem:[%s0 + $0x98] sm:$0xff]
  %v36 = vld [vmem:[%s0 + $0xa0] sm:$0xff]
  %v37 = vld [vmem:[%s0 + $0xa8] sm:$0xff]
  %v38 = vld [vmem:[%s0 + $0xb0] sm:$0xff]
  %v39 = vld [vmem:[%s0 + $0xb8] sm:$0xff]
  %v40 = vld [vmem:[%s0 + $0xc0] sm:$0xff]
  %v41 = vld [vmem:[%s0 + $0xc8] sm:$0xff]
  %v42 = vld [vmem:[%s0 + $0xd0] sm:$0xff]
  %v43 = vld [vmem:[%s0 + $0xd8] sm:$0xff]
  %v44 = vld [vmem:[%s0 + $0xe0] sm:$0xff]
  %v45 = vld [vmem:[%s0 + $0xe8] sm:$0xff]
  %v46 = vld [vmem:[%s0 + $0xf0] sm:$0xff]
  %v47 = vld [vmem:[%s0 + $0xf8] sm:$0xff]
  %v48 = vld [vmem:[%s0 + $0x100] sm:$0xff]
  %v49 = vld [vmem:[%s0 + $0x108] sm:$0xff]
  %v50 = vld [vmem:[%s0 + $0x110] sm:$0xff]
  %v51 = vld [vmem:[%s0 + $0x118] sm:$0xff]
  %v52 = vld [vmem:[%s0 + $0x120] sm:$0x7]
  %v53 = vld [vmem:[%s0 + $0x128] sm:$0x7]
  %v54 = vld [vmem:[%s0 + $0x130] sm:$0x7]
  %v55 = vld [vmem:[%s0 + $0x138] sm:$0x7]
  %vm56 = vcmask 613376
  %v58 = vsel %vm56, %v14, 0
  %v61 = vsel %vm56, %v15, 0
  %vm63 = vcmask 1042432
  %v65 = vsel %vm63, %v52, 0
  %v68 = vsel %vm63, %v53, 0
  %v71 = vsel %vm63, %v54, 0
  %v74 = vsel %vm63, %v55, 0
  %76 = vmatpush.msra.mxu0 0.0
  %77 = vmatpush.msra.mxu0 0.0
  %78 = vmatpush.msra.mxu0 0.0
  %79 = vmatpush.msra.mxu0 0.0
  %80 = vmatpush.msra.mxu0 0.0
  %81 = vmatpush.msra.mxu0 0.0
  %82 = vmatpush.msra.mxu0 %v65
  %83 = vmatpush.msra.mxu0 %v48
  %84 = vmatpush.msra.mxu0 %v44
  %85 = vmatpush.msra.mxu0 %v40
  %86 = vmatpush.msra.mxu0 %v36
  %87 = vmatpush.msra.mxu0 %v32
  %88 = vmatpush.msra.mxu0 %v28
  %89 = vmatpush.msra.mxu0 %v24
  %90 = vmatpush.msra.mxu0 %v20
  %91 = vmatpush.msra.mxu0 %v16
  %92 = vmatmul.f32.gmra.mxu0 %v58
  %v93 = vpop.f32.mrf.mxu0
  %v94 = vadd.f32 0.0, %v93
  %95 = vmatmul.f32.gmra.mxu0 %v61
  %v96 = vpop.f32.mrf.mxu0
  %v97 = vadd.f32 0.0, %v96
  %98 = vdwg.mxu0
  %99 = vmatpush.msra.mxu0 0.0
  %100 = vmatpush.msra.mxu0 0.0
  %101 = vmatpush.msra.mxu0 0.0
  %102 = vmatpush.msra.mxu0 0.0
  %103 = vmatpush.msra.mxu0 0.0
  %104 = vmatpush.msra.mxu0 0.0
  %105 = vmatpush.msra.mxu0 %v68
  %106 = vmatpush.msra.mxu0 %v49
  %107 = vmatpush.msra.mxu0 %v45
  %108 = vmatpush.msra.mxu0 %v41
  %109 = vmatpush.msra.mxu0 %v37
  %110 = vmatpush.msra.mxu0 %v33
  %111 = vmatpush.msra.mxu0 %v29
  %112 = vmatpush.msra.mxu0 %v25
  %113 = vmatpush.msra.mxu0 %v21
  %114 = vmatpush.msra.mxu0 %v17
  %115 = vmatmul.f32.gmra.mxu0 %v58
  %v116 = vpop.f32.mrf.mxu0
  %v117 = vadd.f32 0.0, %v116
  %118 = vmatmul.f32.gmra.mxu0 %v61
  %v119 = vpop.f32.mrf.mxu0
  %v120 = vadd.f32 0.0, %v119
  %121 = vdwg.mxu0
  %122 = vmatpush.msra.mxu0 0.0
  %123 = vmatpush.msra.mxu0 0.0
  %124 = vmatpush.msra.mxu0 0.0
  %125 = vmatpush.msra.mxu0 0.0
  %126 = vmatpush.msra.mxu0 0.0
  %127 = vmatpush.msra.mxu0 0.0
  %128 = vmatpush.msra.mxu0 %v71
  %129 = vmatpush.msra.mxu0 %v50
  %130 = vmatpush.msra.mxu0 %v46
  %131 = vmatpush.msra.mxu0 %v42
  %132 = vmatpush.msra.mxu0 %v38
  %133 = vmatpush.msra.mxu0 %v34
  %134 = vmatpush.msra.mxu0 %v30
  %135 = vmatpush.msra.mxu0 %v26
  %136 = vmatpush.msra.mxu0 %v22
  %137 = vmatpush.msra.mxu0 %v18
  %138 = vmatmul.f32.gmra.mxu0 %v58
  %v139 = vpop.f32.mrf.mxu0
  %v140 = vadd.f32 0.0, %v139
  %141 = vmatmul.f32.gmra.mxu0 %v61
  %v142 = vpop.f32.mrf.mxu0
  %v143 = vadd.f32 0.0, %v142
  %144 = vdwg.mxu0
  %145 = vmatpush.msra.mxu0 0.0
  %146 = vmatpush.msra.mxu0 0.0
  %147 = vmatpush.msra.mxu0 0.0
  %148 = vmatpush.msra.mxu0 0.0
  %149 = vmatpush.msra.mxu0 0.0
  %150 = vmatpush.msra.mxu0 0.0
  %151 = vmatpush.msra.mxu0 %v74
  %152 = vmatpush.msra.mxu0 %v51
  %153 = vmatpush.msra.mxu0 %v47
  %154 = vmatpush.msra.mxu0 %v43
  %155 = vmatpush.msra.mxu0 %v39
  %156 = vmatpush.msra.mxu0 %v35
  %157 = vmatpush.msra.mxu0 %v31
  %158 = vmatpush.msra.mxu0 %v27
  %159 = vmatpush.msra.mxu0 %v23
  %160 = vmatpush.msra.mxu0 %v19
  %161 = vmatmul.f32.gmra.mxu0 %v58
  %v162 = vpop.f32.mrf.mxu0
  %v163 = vadd.f32 0.0, %v162
  %164 = vmatmul.f32.gmra.mxu0 %v61
  %v165 = vpop.f32.mrf.mxu0
  %v166 = vadd.f32 0.0, %v165
  %167 = vdwg.mxu0
  %s168 = scalar_lea.vmem %s0, 320
  %v169 = vld [vmem:[%s168] sm:$0xff]
  %v170 = vld [vmem:[%s168 + $0x8] sm:$0xff]
  %v171 = vld [vmem:[%s168 + $0x10] sm:$0xff]
  %v172 = vld [vmem:[%s168 + $0x18] sm:$0xff]
  %v173 = vld [vmem:[%s168 + $0x20] sm:$0xff]
  %v174 = vld [vmem:[%s168 + $0x28] sm:$0xff]
  %v175 = vld [vmem:[%s168 + $0x30] sm:$0xff]
  %v176 = vld [vmem:[%s168 + $0x38] sm:$0xff]
  %v177 = vld [vmem:[%s168 + $0x40] sm:$0xff]
  %v178 = vld [vmem:[%s168 + $0x48] sm:$0xff]
  %v179 = vld [vmem:[%s168 + $0x50] sm:$0xff]
  %v180 = vld [vmem:[%s168 + $0x58] sm:$0xff]
  %v181 = vld [vmem:[%s168 + $0x60] sm:$0xff]
  %v182 = vld [vmem:[%s168 + $0x68] sm:$0xff]
  %v183 = vld [vmem:[%s168 + $0x70] sm:$0xff]
  %v184 = vld [vmem:[%s168 + $0x78] sm:$0xff]
  %v185 = vld [vmem:[%s168 + $0x80] sm:$0xff]
  %v186 = vld [vmem:[%s168 + $0x88] sm:$0xff]
  %v187 = vld [vmem:[%s168 + $0x90] sm:$0xff]
  %v188 = vld [vmem:[%s168 + $0x98] sm:$0xff]
  %v189 = vld [vmem:[%s168 + $0xa0] sm:$0xff]
  %v190 = vld [vmem:[%s168 + $0xa8] sm:$0xff]
  %v191 = vld [vmem:[%s168 + $0xb0] sm:$0xff]
  %v192 = vld [vmem:[%s168 + $0xb8] sm:$0xff]
  %v193 = vld [vmem:[%s168 + $0xc0] sm:$0xff]
  %v194 = vld [vmem:[%s168 + $0xc8] sm:$0xff]
  %v195 = vld [vmem:[%s168 + $0xd0] sm:$0xff]
  %v196 = vld [vmem:[%s168 + $0xd8] sm:$0xff]
  %v197 = vld [vmem:[%s168 + $0xe0] sm:$0xff]
  %v198 = vld [vmem:[%s168 + $0xe8] sm:$0xff]
  %v199 = vld [vmem:[%s168 + $0xf0] sm:$0xff]
  %v200 = vld [vmem:[%s168 + $0xf8] sm:$0xff]
  %v201 = vld [vmem:[%s168 + $0x100] sm:$0xff]
  %v202 = vld [vmem:[%s168 + $0x108] sm:$0xff]
  %v203 = vld [vmem:[%s168 + $0x110] sm:$0xff]
  %v204 = vld [vmem:[%s168 + $0x118] sm:$0xff]
  %v205 = vld [vmem:[%s168 + $0x120] sm:$0x7]
  %v206 = vld [vmem:[%s168 + $0x128] sm:$0x7]
  %v207 = vld [vmem:[%s168 + $0x130] sm:$0x7]
  %v208 = vld [vmem:[%s168 + $0x138] sm:$0x7]
  %v210 = vsel %vm63, %v205, 0
  %v213 = vsel %vm63, %v206, 0
  %v216 = vsel %vm63, %v207, 0
  %v219 = vsel %vm63, %v208, 0
  %221 = vmatpush.msra.mxu0 0.0
  %222 = vmatpush.msra.mxu0 0.0
  %223 = vmatpush.msra.mxu0 0.0
  %224 = vmatpush.msra.mxu0 0.0
  %225 = vmatpush.msra.mxu0 0.0
  %226 = vmatpush.msra.mxu0 0.0
  %227 = vmatpush.msra.mxu0 %v210
  %228 = vmatpush.msra.mxu0 %v201
  %229 = vmatpush.msra.mxu0 %v197
  %230 = vmatpush.msra.mxu0 %v193
  %231 = vmatpush.msra.mxu0 %v189
  %232 = vmatpush.msra.mxu0 %v185
  %233 = vmatpush.msra.mxu0 %v181
  %234 = vmatpush.msra.mxu0 %v177
  %235 = vmatpush.msra.mxu0 %v173
  %236 = vmatpush.msra.mxu0 %v169
  %237 = vmatmul.f32.gmra.mxu0 %v58
  %v238 = vpop.f32.mrf.mxu0
  %v239 = vadd.f32 0.0, %v238
  %240 = vmatmul.f32.gmra.mxu0 %v61
  %v241 = vpop.f32.mrf.mxu0
  %v242 = vadd.f32 0.0, %v241
  %243 = vdwg.mxu0
  %244 = vmatpush.msra.mxu0 0.0
  %245 = vmatpush.msra.mxu0 0.0
  %246 = vmatpush.msra.mxu0 0.0
  %247 = vmatpush.msra.mxu0 0.0
  %248 = vmatpush.msra.mxu0 0.0
  %249 = vmatpush.msra.mxu0 0.0
  %250 = vmatpush.msra.mxu0 %v213
  %251 = vmatpush.msra.mxu0 %v202
  %252 = vmatpush.msra.mxu0 %v198
  %253 = vmatpush.msra.mxu0 %v194
  %254 = vmatpush.msra.mxu0 %v190
  %255 = vmatpush.msra.mxu0 %v186
  %256 = vmatpush.msra.mxu0 %v182
  %257 = vmatpush.msra.mxu0 %v178
  %258 = vmatpush.msra.mxu0 %v174
  %259 = vmatpush.msra.mxu0 %v170
  %260 = vmatmul.f32.gmra.mxu0 %v58
  %v261 = vpop.f32.mrf.mxu0
  %v262 = vadd.f32 0.0, %v261
  %263 = vmatmul.f32.gmra.mxu0 %v61
  %v264 = vpop.f32.mrf.mxu0
  %v265 = vadd.f32 0.0, %v264
  %266 = vdwg.mxu0
  %267 = vmatpush.msra.mxu0 0.0
  %268 = vmatpush.msra.mxu0 0.0
  %269 = vmatpush.msra.mxu0 0.0
  %270 = vmatpush.msra.mxu0 0.0
  %271 = vmatpush.msra.mxu0 0.0
  %272 = vmatpush.msra.mxu0 0.0
  %273 = vmatpush.msra.mxu0 %v216
  %274 = vmatpush.msra.mxu0 %v203
  %275 = vmatpush.msra.mxu0 %v199
  %276 = vmatpush.msra.mxu0 %v195
  %277 = vmatpush.msra.mxu0 %v191
  %278 = vmatpush.msra.mxu0 %v187
  %279 = vmatpush.msra.mxu0 %v183
  %280 = vmatpush.msra.mxu0 %v179
  %281 = vmatpush.msra.mxu0 %v175
  %282 = vmatpush.msra.mxu0 %v171
  %283 = vmatmul.f32.gmra.mxu0 %v58
  %v284 = vpop.f32.mrf.mxu0
  %v285 = vadd.f32 0.0, %v284
  %286 = vmatmul.f32.gmra.mxu0 %v61
  %v287 = vpop.f32.mrf.mxu0
  %v288 = vadd.f32 0.0, %v287
  %289 = vdwg.mxu0
  %290 = vmatpush.msra.mxu0 0.0
  %291 = vmatpush.msra.mxu0 0.0
  %292 = vmatpush.msra.mxu0 0.0
  %293 = vmatpush.msra.mxu0 0.0
  %294 = vmatpush.msra.mxu0 0.0
  %295 = vmatpush.msra.mxu0 0.0
  %296 = vmatpush.msra.mxu0 %v219
  %297 = vmatpush.msra.mxu0 %v204
  %298 = vmatpush.msra.mxu0 %v200
  %299 = vmatpush.msra.mxu0 %v196
  %300 = vmatpush.msra.mxu0 %v192
  %301 = vmatpush.msra.mxu0 %v188
  %302 = vmatpush.msra.mxu0 %v184
  %303 = vmatpush.msra.mxu0 %v180
  %304 = vmatpush.msra.mxu0 %v176
  %305 = vmatpush.msra.mxu0 %v172
  %306 = vmatmul.f32.gmra.mxu0 %v58
  %v307 = vpop.f32.mrf.mxu0
  %v308 = vadd.f32 0.0, %v307
  %309 = vmatmul.f32.gmra.mxu0 %v61
  %v310 = vpop.f32.mrf.mxu0
  %v311 = vadd.f32 0.0, %v310
  %312 = vdwg.mxu0
  %v313 = vmax.f32 %v94, %v239
  %v314 = vmax.f32 %v117, %v262
  %v315 = vmax.f32 %v140, %v285
  %v316 = vmax.f32 %v163, %v308
  %v317 = vmax.f32 %v97, %v242
  %v318 = vmax.f32 %v120, %v265
  %v319 = vmax.f32 %v143, %v288
  %v320 = vmax.f32 %v166, %v311
  %s321 = scalar_lea.vmem %s0, 640
  %v322 = vld [vmem:[%s321] sm:$0xff]
  %v323 = vld [vmem:[%s321 + $0x8] sm:$0xff]
  %v324 = vld [vmem:[%s321 + $0x10] sm:$0xff]
  %v325 = vld [vmem:[%s321 + $0x18] sm:$0xff]
  %v326 = vld [vmem:[%s321 + $0x20] sm:$0xff]
  %v327 = vld [vmem:[%s321 + $0x28] sm:$0xff]
  %v328 = vld [vmem:[%s321 + $0x30] sm:$0xff]
  %v329 = vld [vmem:[%s321 + $0x38] sm:$0xff]
  %v330 = vld [vmem:[%s321 + $0x40] sm:$0xff]
  %v331 = vld [vmem:[%s321 + $0x48] sm:$0xff]
  %v332 = vld [vmem:[%s321 + $0x50] sm:$0xff]
  %v333 = vld [vmem:[%s321 + $0x58] sm:$0xff]
  %v334 = vld [vmem:[%s321 + $0x60] sm:$0xff]
  %v335 = vld [vmem:[%s321 + $0x68] sm:$0xff]
  %v336 = vld [vmem:[%s321 + $0x70] sm:$0xff]
  %v337 = vld [vmem:[%s321 + $0x78] sm:$0xff]
  %v338 = vld [vmem:[%s321 + $0x80] sm:$0xff]
  %v339 = vld [vmem:[%s321 + $0x88] sm:$0xff]
  %v340 = vld [vmem:[%s321 + $0x90] sm:$0xff]
  %v341 = vld [vmem:[%s321 + $0x98] sm:$0xff]
  %v342 = vld [vmem:[%s321 + $0xa0] sm:$0xff]
  %v343 = vld [vmem:[%s321 + $0xa8] sm:$0xff]
  %v344 = vld [vmem:[%s321 + $0xb0] sm:$0xff]
  %v345 = vld [vmem:[%s321 + $0xb8] sm:$0xff]
  %v346 = vld [vmem:[%s321 + $0xc0] sm:$0xff]
  %v347 = vld [vmem:[%s321 + $0xc8] sm:$0xff]
  %v348 = vld [vmem:[%s321 + $0xd0] sm:$0xff]
  %v349 = vld [vmem:[%s321 + $0xd8] sm:$0xff]
  %v350 = vld [vmem:[%s321 + $0xe0] sm:$0xff]
  %v351 = vld [vmem:[%s321 + $0xe8] sm:$0xff]
  %v352 = vld [vmem:[%s321 + $0xf0] sm:$0xff]
  %v353 = vld [vmem:[%s321 + $0xf8] sm:$0xff]
  %v354 = vld [vmem:[%s321 + $0x100] sm:$0xff]
  %v355 = vld [vmem:[%s321 + $0x108] sm:$0xff]
  %v356 = vld [vmem:[%s321 + $0x110] sm:$0xff]
  %v357 = vld [vmem:[%s321 + $0x118] sm:$0xff]
  %v358 = vld [vmem:[%s321 + $0x120] sm:$0x7]
  %v359 = vld [vmem:[%s321 + $0x128] sm:$0x7]
  %v360 = vld [vmem:[%s321 + $0x130] sm:$0x7]
  %v361 = vld [vmem:[%s321 + $0x138] sm:$0x7]
  %v363 = vsel %vm63, %v358, 0
  %v366 = vsel %vm63, %v359, 0
  %v369 = vsel %vm63, %v360, 0
  %v372 = vsel %vm63, %v361, 0
  %374 = vmatpush.msra.mxu0 0.0
  %375 = vmatpush.msra.mxu0 0.0
  %376 = vmatpush.msra.mxu0 0.0
  %377 = vmatpush.msra.mxu0 0.0
  %378 = vmatpush.msra.mxu0 0.0
  %379 = vmatpush.msra.mxu0 0.0
  %380 = vmatpush.msra.mxu0 %v363
  %381 = vmatpush.msra.mxu0 %v354
  %382 = vmatpush.msra.mxu0 %v350
  %383 = vmatpush.msra.mxu0 %v346
  %384 = vmatpush.msra.mxu0 %v342
  %385 = vmatpush.msra.mxu0 %v338
  %386 = vmatpush.msra.mxu0 %v334
  %387 = vmatpush.msra.mxu0 %v330
  %388 = vmatpush.msra.mxu0 %v326
  %389 = vmatpush.msra.mxu0 %v322
  %390 = vmatmul.f32.gmra.mxu0 %v58
  %v391 = vpop.f32.mrf.mxu0
  %v392 = vadd.f32 0.0, %v391
  %393 = vmatmul.f32.gmra.mxu0 %v61
  %v394 = vpop.f32.mrf.mxu0
  %v395 = vadd.f32 0.0, %v394
  %396 = vdwg.mxu0
  %397 = vmatpush.msra.mxu0 0.0
  %398 = vmatpush.msra.mxu0 0.0
  %399 = vmatpush.msra.mxu0 0.0
  %400 = vmatpush.msra.mxu0 0.0
  %401 = vmatpush.msra.mxu0 0.0
  %402 = vmatpush.msra.mxu0 0.0
  %403 = vmatpush.msra.mxu0 %v366
  %404 = vmatpush.msra.mxu0 %v355
  %405 = vmatpush.msra.mxu0 %v351
  %406 = vmatpush.msra.mxu0 %v347
  %407 = vmatpush.msra.mxu0 %v343
  %408 = vmatpush.msra.mxu0 %v339
  %409 = vmatpush.msra.mxu0 %v335
  %410 = vmatpush.msra.mxu0 %v331
  %411 = vmatpush.msra.mxu0 %v327
  %412 = vmatpush.msra.mxu0 %v323
  %413 = vmatmul.f32.gmra.mxu0 %v58
  %v414 = vpop.f32.mrf.mxu0
  %v415 = vadd.f32 0.0, %v414
  %416 = vmatmul.f32.gmra.mxu0 %v61
  %v417 = vpop.f32.mrf.mxu0
  %v418 = vadd.f32 0.0, %v417
  %419 = vdwg.mxu0
  %420 = vmatpush.msra.mxu0 0.0
  %421 = vmatpush.msra.mxu0 0.0
  %422 = vmatpush.msra.mxu0 0.0
  %423 = vmatpush.msra.mxu0 0.0
  %424 = vmatpush.msra.mxu0 0.0
  %425 = vmatpush.msra.mxu0 0.0
  %426 = vmatpush.msra.mxu0 %v369
  %427 = vmatpush.msra.mxu0 %v356
  %428 = vmatpush.msra.mxu0 %v352
  %429 = vmatpush.msra.mxu0 %v348
  %430 = vmatpush.msra.mxu0 %v344
  %431 = vmatpush.msra.mxu0 %v340
  %432 = vmatpush.msra.mxu0 %v336
  %433 = vmatpush.msra.mxu0 %v332
  %434 = vmatpush.msra.mxu0 %v328
  %435 = vmatpush.msra.mxu0 %v324
  %436 = vmatmul.f32.gmra.mxu0 %v58
  %v437 = vpop.f32.mrf.mxu0
  %v438 = vadd.f32 0.0, %v437
  %439 = vmatmul.f32.gmra.mxu0 %v61
  %v440 = vpop.f32.mrf.mxu0
  %v441 = vadd.f32 0.0, %v440
  %442 = vdwg.mxu0
  %443 = vmatpush.msra.mxu0 0.0
  %444 = vmatpush.msra.mxu0 0.0
  %445 = vmatpush.msra.mxu0 0.0
  %446 = vmatpush.msra.mxu0 0.0
  %447 = vmatpush.msra.mxu0 0.0
  %448 = vmatpush.msra.mxu0 0.0
  %449 = vmatpush.msra.mxu0 %v372
  %450 = vmatpush.msra.mxu0 %v357
  %451 = vmatpush.msra.mxu0 %v353
  %452 = vmatpush.msra.mxu0 %v349
  %453 = vmatpush.msra.mxu0 %v345
  %454 = vmatpush.msra.mxu0 %v341
  %455 = vmatpush.msra.mxu0 %v337
  %456 = vmatpush.msra.mxu0 %v333
  %457 = vmatpush.msra.mxu0 %v329
  %458 = vmatpush.msra.mxu0 %v325
  %459 = vmatmul.f32.gmra.mxu0 %v58
  %v460 = vpop.f32.mrf.mxu0
  %v461 = vadd.f32 0.0, %v460
  %462 = vmatmul.f32.gmra.mxu0 %v61
  %v463 = vpop.f32.mrf.mxu0
  %v464 = vadd.f32 0.0, %v463
  %465 = vdwg.mxu0
  %v466 = vmax.f32 %v313, %v392
  %v467 = vmax.f32 %v314, %v415
  %v468 = vmax.f32 %v315, %v438
  %v469 = vmax.f32 %v316, %v461
  %v470 = vmax.f32 %v317, %v395
  %v471 = vmax.f32 %v318, %v418
  %v472 = vmax.f32 %v319, %v441
  %v473 = vmax.f32 %v320, %v464
  %s474 = scalar_lea.vmem %s0, 960
  %v475 = vld [vmem:[%s474] sm:$0xff]
  %v476 = vld [vmem:[%s474 + $0x8] sm:$0xff]
  %v477 = vld [vmem:[%s474 + $0x10] sm:$0xff]
  %v478 = vld [vmem:[%s474 + $0x18] sm:$0xff]
  %v479 = vld [vmem:[%s474 + $0x20] sm:$0xff]
  %v480 = vld [vmem:[%s474 + $0x28] sm:$0xff]
  %v481 = vld [vmem:[%s474 + $0x30] sm:$0xff]
  %v482 = vld [vmem:[%s474 + $0x38] sm:$0xff]
  %v483 = vld [vmem:[%s474 + $0x40] sm:$0xff]
  %v484 = vld [vmem:[%s474 + $0x48] sm:$0xff]
  %v485 = vld [vmem:[%s474 + $0x50] sm:$0xff]
  %v486 = vld [vmem:[%s474 + $0x58] sm:$0xff]
  %v487 = vld [vmem:[%s474 + $0x60] sm:$0xff]
  %v488 = vld [vmem:[%s474 + $0x68] sm:$0xff]
  %v489 = vld [vmem:[%s474 + $0x70] sm:$0xff]
  %v490 = vld [vmem:[%s474 + $0x78] sm:$0xff]
  %v491 = vld [vmem:[%s474 + $0x80] sm:$0xff]
  %v492 = vld [vmem:[%s474 + $0x88] sm:$0xff]
  %v493 = vld [vmem:[%s474 + $0x90] sm:$0xff]
  %v494 = vld [vmem:[%s474 + $0x98] sm:$0xff]
  %v495 = vld [vmem:[%s474 + $0xa0] sm:$0xff]
  %v496 = vld [vmem:[%s474 + $0xa8] sm:$0xff]
  %v497 = vld [vmem:[%s474 + $0xb0] sm:$0xff]
  %v498 = vld [vmem:[%s474 + $0xb8] sm:$0xff]
  %v499 = vld [vmem:[%s474 + $0xc0] sm:$0xff]
  %v500 = vld [vmem:[%s474 + $0xc8] sm:$0xff]
  %v501 = vld [vmem:[%s474 + $0xd0] sm:$0xff]
  %v502 = vld [vmem:[%s474 + $0xd8] sm:$0xff]
  %v503 = vld [vmem:[%s474 + $0xe0] sm:$0xff]
  %v504 = vld [vmem:[%s474 + $0xe8] sm:$0xff]
  %v505 = vld [vmem:[%s474 + $0xf0] sm:$0xff]
  %v506 = vld [vmem:[%s474 + $0xf8] sm:$0xff]
  %v507 = vld [vmem:[%s474 + $0x100] sm:$0xff]
  %v508 = vld [vmem:[%s474 + $0x108] sm:$0xff]
  %v509 = vld [vmem:[%s474 + $0x110] sm:$0xff]
  %v510 = vld [vmem:[%s474 + $0x118] sm:$0xff]
  %v511 = vld [vmem:[%s474 + $0x120] sm:$0x7]
  %v512 = vld [vmem:[%s474 + $0x128] sm:$0x7]
  %v513 = vld [vmem:[%s474 + $0x130] sm:$0x7]
  %v514 = vld [vmem:[%s474 + $0x138] sm:$0x7]
  %v516 = vsel %vm63, %v511, 0
  %v519 = vsel %vm63, %v512, 0
  %v522 = vsel %vm63, %v513, 0
  %v525 = vsel %vm63, %v514, 0
  %527 = vmatpush.msra.mxu0 0.0
  %528 = vmatpush.msra.mxu0 0.0
  %529 = vmatpush.msra.mxu0 0.0
  %530 = vmatpush.msra.mxu0 0.0
  %531 = vmatpush.msra.mxu0 0.0
  %532 = vmatpush.msra.mxu0 0.0
  %533 = vmatpush.msra.mxu0 %v516
  %534 = vmatpush.msra.mxu0 %v507
  %535 = vmatpush.msra.mxu0 %v503
  %536 = vmatpush.msra.mxu0 %v499
  %537 = vmatpush.msra.mxu0 %v495
  %538 = vmatpush.msra.mxu0 %v491
  %539 = vmatpush.msra.mxu0 %v487
  %540 = vmatpush.msra.mxu0 %v483
  %541 = vmatpush.msra.mxu0 %v479
  %542 = vmatpush.msra.mxu0 %v475
  %543 = vmatmul.f32.gmra.mxu0 %v58
  %v544 = vpop.f32.mrf.mxu0
  %v545 = vadd.f32 0.0, %v544
  %546 = vmatmul.f32.gmra.mxu0 %v61
  %v547 = vpop.f32.mrf.mxu0
  %v548 = vadd.f32 0.0, %v547
  %549 = vdwg.mxu0
  %550 = vmatpush.msra.mxu0 0.0
  %551 = vmatpush.msra.mxu0 0.0
  %552 = vmatpush.msra.mxu0 0.0
  %553 = vmatpush.msra.mxu0 0.0
  %554 = vmatpush.msra.mxu0 0.0
  %555 = vmatpush.msra.mxu0 0.0
  %556 = vmatpush.msra.mxu0 %v519
  %557 = vmatpush.msra.mxu0 %v508
  %558 = vmatpush.msra.mxu0 %v504
  %559 = vmatpush.msra.mxu0 %v500
  %560 = vmatpush.msra.mxu0 %v496
  %561 = vmatpush.msra.mxu0 %v492
  %562 = vmatpush.msra.mxu0 %v488
  %563 = vmatpush.msra.mxu0 %v484
  %564 = vmatpush.msra.mxu0 %v480
  %565 = vmatpush.msra.mxu0 %v476
  %566 = vmatmul.f32.gmra.mxu0 %v58
  %v567 = vpop.f32.mrf.mxu0
  %v568 = vadd.f32 0.0, %v567
  %569 = vmatmul.f32.gmra.mxu0 %v61
  %v570 = vpop.f32.mrf.mxu0
  %v571 = vadd.f32 0.0, %v570
  %572 = vdwg.mxu0
  %573 = vmatpush.msra.mxu0 0.0
  %574 = vmatpush.msra.mxu0 0.0
  %575 = vmatpush.msra.mxu0 0.0
  %576 = vmatpush.msra.mxu0 0.0
  %577 = vmatpush.msra.mxu0 0.0
  %578 = vmatpush.msra.mxu0 0.0
  %579 = vmatpush.msra.mxu0 %v522
  %580 = vmatpush.msra.mxu0 %v509
  %581 = vmatpush.msra.mxu0 %v505
  %582 = vmatpush.msra.mxu0 %v501
  %583 = vmatpush.msra.mxu0 %v497
  %584 = vmatpush.msra.mxu0 %v493
  %585 = vmatpush.msra.mxu0 %v489
  %586 = vmatpush.msra.mxu0 %v485
  %587 = vmatpush.msra.mxu0 %v481
  %588 = vmatpush.msra.mxu0 %v477
  %589 = vmatmul.f32.gmra.mxu0 %v58
  %v590 = vpop.f32.mrf.mxu0
  %v591 = vadd.f32 0.0, %v590
  %592 = vmatmul.f32.gmra.mxu0 %v61
  %v593 = vpop.f32.mrf.mxu0
  %v594 = vadd.f32 0.0, %v593
  %595 = vdwg.mxu0
  %596 = vmatpush.msra.mxu0 0.0
  %597 = vmatpush.msra.mxu0 0.0
  %598 = vmatpush.msra.mxu0 0.0
  %599 = vmatpush.msra.mxu0 0.0
  %600 = vmatpush.msra.mxu0 0.0
  %601 = vmatpush.msra.mxu0 0.0
  %602 = vmatpush.msra.mxu0 %v525
  %603 = vmatpush.msra.mxu0 %v510
  %604 = vmatpush.msra.mxu0 %v506
  %605 = vmatpush.msra.mxu0 %v502
  %606 = vmatpush.msra.mxu0 %v498
  %607 = vmatpush.msra.mxu0 %v494
  %608 = vmatpush.msra.mxu0 %v490
  %609 = vmatpush.msra.mxu0 %v486
  %610 = vmatpush.msra.mxu0 %v482
  %611 = vmatpush.msra.mxu0 %v478
  %612 = vmatmul.f32.gmra.mxu0 %v58
  %v613 = vpop.f32.mrf.mxu0
  %v614 = vadd.f32 0.0, %v613
  %615 = vmatmul.f32.gmra.mxu0 %v61
  %v616 = vpop.f32.mrf.mxu0
  %v617 = vadd.f32 0.0, %v616
  %618 = vdwg.mxu0
  %v619 = vmax.f32 %v466, %v545
  %v620 = vmax.f32 %v467, %v568
  %v621 = vmax.f32 %v468, %v591
  %v622 = vmax.f32 %v469, %v614
  %v623 = vmax.f32 %v470, %v548
  %v624 = vmax.f32 %v471, %v571
  %v625 = vmax.f32 %v472, %v594
  %v626 = vmax.f32 %v473, %v617
  %v627 = vld [vmem:[%s2] sm:$0xff]
  %v628 = vld [vmem:[%s2 + $0x8] sm:$0xff]
  %630 = vset.pattern.permute.xlu0 0
  %631 = vperm.xlu0 %630, %v627
  %v632 = vpop.permute.xlu0 %631
  %635 = vset.pattern.permute.xlu0 0
  %636 = vperm.xlu0 %635, %v628
  %v637 = vpop.permute.xlu0 %636
  %v639 = vadd.f32 %v619, %v632
  %v640 = vadd.f32 %v620, %v632
  %v641 = vadd.f32 %v621, %v632
  %v642 = vadd.f32 %v622, %v632
  %v643 = vadd.f32 %v623, %v637
  %v644 = vadd.f32 %v624, %v637
  %v645 = vadd.f32 %v625, %v637
  %v646 = vadd.f32 %v626, %v637
  %v647 = vmax.f32 %v639, 0.0
  %v648 = vmax.f32 %v640, 0.0
  %v649 = vmax.f32 %v641, 0.0
  %v650 = vmax.f32 %v642, 0.0
  %v651 = vmax.f32 %v643, 0.0
  %v652 = vmax.f32 %v644, 0.0
  %v653 = vmax.f32 %v645, 0.0
  %v654 = vmax.f32 %v646, 0.0
  %655 = vst [vmem:[%s3] sm:$0xff] %v647
  %656 = vst [vmem:[%s3 + $0x8] sm:$0xff] %v648
  %657 = vst [vmem:[%s3 + $0x10] sm:$0xff] %v649
  %vm658 = vcmask 64512
  %659 = vst.msk [vmem:[%s3 + $0x18] sm:$0xff] %vm658, %v650
  %660 = vst [vmem:[%s3 + $0x20] sm:$0xff] %v651
  %661 = vst [vmem:[%s3 + $0x28] sm:$0xff] %v652
  %662 = vst [vmem:[%s3 + $0x30] sm:$0xff] %v653
  %663 = vst.msk [vmem:[%s3 + $0x38] sm:$0xff] %vm658, %v654
  // Predicated region
  $region14: #{lenet_forward.3} parent=0 // pred_check
    _
  $region15: #{lenet_forward.3} parent=0 // pred_check_branch
    %665 = sbr.rel (0) target = $region17
  $region16: #{lenet_forward.3} parent=0 // pred_region
    _
  $region17: #{lenet_forward.3} parent=0 // pred_fallthru
    _
  // Predicated region
  $region18: #{lenet_forward.3} parent=0 // pred_check
    _
  $region19: #{lenet_forward.3} parent=0 // pred_check_branch
    %667 = sbr.rel (0) target = $region21
  $region20: #{lenet_forward.3} parent=0 // pred_region
    _
  $region21: #{lenet_forward.3} parent=0 // pred_fallthru
    _

// kernel: lenet_forward.4
$region0: #{lenet_forward.4}
  #allocation0 [shape = 'u32[]', space=smem, size = 0x4, offset = 0x4, fixed_abs, tag = 'smem constant byte address 0x4 - core index']
  #allocation1 [shape = 'u32[72,128]{1,0:T(1,128)}', space=vmem, size = 0x9000, scoped, tag = 'internal scratch']
  %s0 = inlined_call_operand.vmem [shape: f32[4,400,50], index: 0, kind: input, shape index: {}]
  %s1 = inlined_call_operand.vmem [shape: f32[32,400], index: 1, kind: input, shape index: {}]
  %s2 = inlined_call_operand.vmem [shape: f32[32,1], index: 2, kind: input, shape index: {}]
  %s3 = inlined_call_operand.vmem [shape: f32[32,50], index: 3, kind: output, shape index: {}]
  %s4 = sld [smem:[#allocation0]]
  $region22: #{lenet_forward.4} parent=0
    _
  %s6 = ssub.s32 1, %s4
  %s7 = scalar_select 0, %s6, %s4
  // Predicated region
  $region2: #{lenet_forward.4} parent=0 // pred_check
    _
  $region3: #{lenet_forward.4} parent=0 // pred_check_branch
    %9 = sbr.rel (0) target = $region5
  $region4: #{lenet_forward.4} parent=0 // pred_region
    _
  $region5: #{lenet_forward.4} parent=0 // pred_fallthru
    _
  // Predicated region
  $region6: #{lenet_forward.4} parent=0 // pred_check
    _
  $region7: #{lenet_forward.4} parent=0 // pred_check_branch
    %11 = sbr.rel (0) target = $region9
  $region8: #{lenet_forward.4} parent=0 // pred_region
    _
  $region9: #{lenet_forward.4} parent=0 // pred_fallthru
    _
  // Predicated region
  $region10: #{lenet_forward.4} parent=0 // pred_check
    _
  $region11: #{lenet_forward.4} parent=0 // pred_check_branch
    %13 = sbr.rel (0) target = $region13
  $region12: #{lenet_forward.4} parent=0 // pred_region
    _
  $region13: #{lenet_forward.4} parent=0 // pred_fallthru
    _
  %v14 = vld [vmem:[%s1] sm:$0xff]
  %v15 = vld [vmem:[%s1 + $0x8] sm:$0xff]
  %v16 = vld [vmem:[%s1 + $0x10] sm:$0xff]
  %v17 = vld [vmem:[%s1 + $0x18] sm:$0xff]
  %v18 = vld [vmem:[%s1 + $0x20] sm:$0xff]
  %v19 = vld [vmem:[%s1 + $0x28] sm:$0xff]
  %v20 = vld [vmem:[%s1 + $0x30] sm:$0xff]
  %v21 = vld [vmem:[%s1 + $0x38] sm:$0xff]
  %v22 = vld [vmem:[%s1 + $0x40] sm:$0xff]
  %v23 = vld [vmem:[%s1 + $0x48] sm:$0xff]
  %v24 = vld [vmem:[%s1 + $0x50] sm:$0xff]
  %v25 = vld [vmem:[%s1 + $0x58] sm:$0xff]
  %v26 = vld [vmem:[%s1 + $0x60] sm:$0xff]
  %v27 = vld [vmem:[%s1 + $0x68] sm:$0xff]
  %v28 = vld [vmem:[%s1 + $0x70] sm:$0xff]
  %v29 = vld [vmem:[%s1 + $0x78] sm:$0xff]
  %v30 = vld [vmem:[%s0] sm:$0xff]
  %v31 = vld [vmem:[%s0 + $0x8] sm:$0xff]
  %v32 = vld [vmem:[%s0 + $0x10] sm:$0xff]
  %v33 = vld [vmem:[%s0 + $0x18] sm:$0xff]
  %v34 = vld [vmem:[%s0 + $0x20] sm:$0xff]
  %v35 = vld [vmem:[%s0 + $0x28] sm:$0xff]
  %v36 = vld [vmem:[%s0 + $0x30] sm:$0xff]
  %v37 = vld [vmem:[%s0 + $0x38] sm:$0xff]
  %v38 = vld [vmem:[%s0 + $0x40] sm:$0xff]
  %v39 = vld [vmem:[%s0 + $0x48] sm:$0xff]
  %v40 = vld [vmem:[%s0 + $0x50] sm:$0xff]
  %v41 = vld [vmem:[%s0 + $0x58] sm:$0xff]
  %v42 = vld [vmem:[%s0 + $0x60] sm:$0xff]
  %v43 = vld [vmem:[%s0 + $0x68] sm:$0xff]
  %v44 = vld [vmem:[%s0 + $0x70] sm:$0xff]
  %v45 = vld [vmem:[%s0 + $0x78] sm:$0xff]
  %v46 = vld [vmem:[%s0 + $0x80] sm:$0xff]
  %v47 = vld [vmem:[%s0 + $0x88] sm:$0xff]
  %v48 = vld [vmem:[%s0 + $0x90] sm:$0xff]
  %v49 = vld [vmem:[%s0 + $0x98] sm:$0xff]
  %v50 = vld [vmem:[%s0 + $0xa0] sm:$0xff]
  %v51 = vld [vmem:[%s0 + $0xa8] sm:$0xff]
  %v52 = vld [vmem:[%s0 + $0xb0] sm:$0xff]
  %v53 = vld [vmem:[%s0 + $0xb8] sm:$0xff]
  %v54 = vld [vmem:[%s0 + $0xc0] sm:$0xff]
  %v55 = vld [vmem:[%s0 + $0xc8] sm:$0xff]
  %v56 = vld [vmem:[%s0 + $0xd0] sm:$0xff]
  %v57 = vld [vmem:[%s0 + $0xd8] sm:$0xff]
  %v58 = vld [vmem:[%s0 + $0xe0] sm:$0xff]
  %v59 = vld [vmem:[%s0 + $0xe8] sm:$0xff]
  %v60 = vld [vmem:[%s0 + $0xf0] sm:$0xff]
  %v61 = vld [vmem:[%s0 + $0xf8] sm:$0xff]
  %v62 = vld [vmem:[%s0 + $0x100] sm:$0xff]
  %v63 = vld [vmem:[%s0 + $0x108] sm:$0xff]
  %v64 = vld [vmem:[%s0 + $0x110] sm:$0xff]
  %v65 = vld [vmem:[%s0 + $0x118] sm:$0xff]
  %v66 = vld [vmem:[%s0 + $0x120] sm:$0xff]
  %v67 = vld [vmem:[%s0 + $0x128] sm:$0xff]
  %v68 = vld [vmem:[%s0 + $0x130] sm:$0xff]
  %v69 = vld [vmem:[%s0 + $0x138] sm:$0xff]
  %v70 = vld [vmem:[%s0 + $0x140] sm:$0xff]
  %v71 = vld [vmem:[%s0 + $0x148] sm:$0xff]
  %v72 = vld [vmem:[%s0 + $0x150] sm:$0xff]
  %v73 = vld [vmem:[%s0 + $0x158] sm:$0xff]
  %v74 = vld [vmem:[%s0 + $0x160] sm:$0xff]
  %v75 = vld [vmem:[%s0 + $0x168] sm:$0xff]
  %v76 = vld [vmem:[%s0 + $0x170] sm:$0xff]
  %v77 = vld [vmem:[%s0 + $0x178] sm:$0xff]
  %v78 = vld [vmem:[%s0 + $0x180] sm:$0xff]
  %v79 = vld [vmem:[%s0 + $0x188] sm:$0xff]
  %vm80 = vcmask 130048
  %v82 = vsel %vm80, %v17, 0
  %v85 = vsel %vm80, %v21, 0
  %v88 = vsel %vm80, %v25, 0
  %v91 = vsel %vm80, %v29, 0
  %93 = vmatpush.msra.mxu0 %v45
  %94 = vmatpush.msra.mxu0 %v44
  %95 = vmatpush.msra.mxu0 %v43
  %96 = vmatpush.msra.mxu0 %v42
  %97 = vmatpush.msra.mxu0 %v41
  %98 = vmatpush.msra.mxu0 %v40
  %99 = vmatpush.msra.mxu0 %v39
  %100 = vmatpush.msra.mxu0 %v38
  %101 = vmatpush.msra.mxu0 %v37
  %102 = vmatpush.msra.mxu0 %v36
  %103 = vmatpush.msra.mxu0 %v35
  %104 = vmatpush.msra.mxu0 %v34
  %105 = vmatpush.msra.mxu0 %v33
  %106 = vmatpush.msra.mxu0 %v32
  %107 = vmatpush.msra.mxu0 %v31
  %108 = vmatpush.msra.mxu0 %v30
  %109 = vmatmul.f32.gmra.mxu0 %v14
  %v110 = vpop.f32.mrf.mxu0
  %v111 = vadd.f32 0.0, %v110
  %112 = vmatmul.f32.gmra.mxu0 %v18
  %v113 = vpop.f32.mrf.mxu0
  %v114 = vadd.f32 0.0, %v113
  %115 = vmatmul.f32.gmra.mxu0 %v22
  %v116 = vpop.f32.mrf.mxu0
  %v117 = vadd.f32 0.0, %v116
  %118 = vmatmul.f32.gmra.mxu0 %v26
  %v119 = vpop.f32.mrf.mxu0
  %v120 = vadd.f32 0.0, %v119
  %121 = vdwg.mxu0
  %122 = vmatpush.msra.mxu0 %v61
  %123 = vmatpush.msra.mxu0 %v60
  %124 = vmatpush.msra.mxu0 %v59
  %125 = vmatpush.msra.mxu0 %v58
  %126 = vmatpush.msra.mxu0 %v57
  %127 = vmatpush.msra.mxu0 %v56
  %128 = vmatpush.msra.mxu0 %v55
  %129 = vmatpush.msra.mxu0 %v54
  %130 = vmatpush.msra.mxu0 %v53
  %131 = vmatpush.msra.mxu0 %v52
  %132 = vmatpush.msra.mxu0 %v51
  %133 = vmatpush.msra.mxu0 %v50
  %134 = vmatpush.msra.mxu0 %v49
  %135 = vmatpush.msra.mxu0 %v48
  %136 = vmatpush.msra.mxu0 %v47
  %137 = vmatpush.msra.mxu0 %v46
  %138 = vmatmul.f32.gmra.mxu0 %v15
  %v139 = vpop.f32.mrf.mxu0
  %v140 = vadd.f32 %v111, %v139
  %141 = vmatmul.f32.gmra.mxu0 %v19
  %v142 = vpop.f32.mrf.mxu0
  %v143 = vadd.f32 %v114, %v142
  %144 = vmatmul.f32.gmra.mxu0 %v23
  %v145 = vpop.f32.mrf.mxu0
  %v146 = vadd.f32 %v117, %v145
  %147 = vmatmul.f32.gmra.mxu0 %v27
  %v148 = vpop.f32.mrf.mxu0
  %v149 = vadd.f32 %v120, %v148
  %150 = vdwg.mxu0
  %151 = vmatpush.msra.mxu0 %v77
  %152 = vmatpush.msra.mxu0 %v76
  %153 = vmatpush.msra.mxu0 %v75
  %154 = vmatpush.msra.mxu0 %v74
  %155 = vmatpush.msra.mxu0 %v73
  %156 = vmatpush.msra.mxu0 %v72
  %157 = vmatpush.msra.mxu0 %v71
  %158 = vmatpush.msra.mxu0 %v70
  %159 = vmatpush.msra.mxu0 %v69
  %160 = vmatpush.msra.mxu0 %v68
  %161 = vmatpush.msra.mxu0 %v67
  %162 = vmatpush.msra.mxu0 %v66
  %163 = vmatpush.msra.mxu0 %v65
  %164 = vmatpush.msra.mxu0 %v64
  %165 = vmatpush.msra.mxu0 %v63
  %166 = vmatpush.msra.mxu0 %v62
  %167 = vmatmul.f32.gmra.mxu0 %v16
  %v168 = vpop.f32.mrf.mxu0
  %v169 = vadd.f32 %v140, %v168
  %170 = vmatmul.f32.gmra.mxu0 %v20
  %v171 = vpop.f32.mrf.mxu0
  %v172 = vadd.f32 %v143, %v171
  %173 = vmatmul.f32.gmra.mxu0 %v24
  %v174 = vpop.f32.mrf.mxu0
  %v175 = vadd.f32 %v146, %v174
  %176 = vmatmul.f32.gmra.mxu0 %v28
  %v177 = vpop.f32.mrf.mxu0
  %v178 = vadd.f32 %v149, %v177
  %179 = vdwg.mxu0
  %180 = vmatpush.msra.mxu0 0.0
  %181 = vmatpush.msra.mxu0 0.0
  %182 = vmatpush.msra.mxu0 0.0
  %183 = vmatpush.msra.mxu0 0.0
  %184 = vmatpush.msra.mxu0 0.0
  %185 = vmatpush.msra.mxu0 0.0
  %186 = vmatpush.msra.mxu0 0.0
  %187 = vmatpush.msra.mxu0 0.0
  %188 = vmatpush.msra.mxu0 0.0
  %189 = vmatpush.msra.mxu0 0.0
  %190 = vmatpush.msra.mxu0 0.0
  %191 = vmatpush.msra.mxu0 0.0
  %192 = vmatpush.msra.mxu0 0.0
  %193 = vmatpush.msra.mxu0 0.0
  %194 = vmatpush.msra.mxu0 %v79
  %195 = vmatpush.msra.mxu0 %v78
  %196 = vmatmul.f32.gmra.mxu0 %v82
  %v197 = vpop.f32.mrf.mxu0
  %v198 = vadd.f32 %v169, %v197
  %199 = vmatmul.f32.gmra.mxu0 %v85
  %v200 = vpop.f32.mrf.mxu0
  %v201 = vadd.f32 %v172, %v200
  %202 = vmatmul.f32.gmra.mxu0 %v88
  %v203 = vpop.f32.mrf.mxu0
  %v204 = vadd.f32 %v175, %v203
  %205 = vmatmul.f32.gmra.mxu0 %v91
  %v206 = vpop.f32.mrf.mxu0
  %v207 = vadd.f32 %v178, %v206
  %208 = vdwg.mxu0
  %s209 = scalar_lea.vmem %s0, 400
  %v210 = vld [vmem:[%s209] sm:$0xff]
  %v211 = vld [vmem:[%s209 + $0x8] sm:$0xff]
  %v212 = vld [vmem:[%s209 + $0x10] sm:$0xff]
  %v213 = vld [vmem:[%s209 + $0x18] sm:$0xff]
  %v214 = vld [vmem:[%s209 + $0x20] sm:$0xff]
  %v215 = vld [vmem:[%s209 + $0x28] sm:$0xff]
  %v216 = vld [vmem:[%s209 + $0x30] sm:$0xff]
  %v217 = vld [vmem:[%s209 + $0x38] sm:$0xff]
  %v218 = vld [vmem:[%s209 + $0x40] sm:$0xff]
  %v219 = vld [vmem:[%s209 + $0x48] sm:$0xff]
  %v220 = vld [vmem:[%s209 + $0x50] sm:$0xff]
  %v221 = vld [vmem:[%s209 + $0x58] sm:$0xff]
  %v222 = vld [vmem:[%s209 + $0x60] sm:$0xff]
  %v223 = vld [vmem:[%s209 + $0x68] sm:$0xff]
  %v224 = vld [vmem:[%s209 + $0x70] sm:$0xff]
  %v225 = vld [vmem:[%s209 + $0x78] sm:$0xff]
  %v226 = vld [vmem:[%s209 + $0x80] sm:$0xff]
  %v227 = vld [vmem:[%s209 + $0x88] sm:$0xff]
  %v228 = vld [vmem:[%s209 + $0x90] sm:$0xff]
  %v229 = vld [vmem:[%s209 + $0x98] sm:$0xff]
  %v230 = vld [vmem:[%s209 + $0xa0] sm:$0xff]
  %v231 = vld [vmem:[%s209 + $0xa8] sm:$0xff]
  %v232 = vld [vmem:[%s209 + $0xb0] sm:$0xff]
  %v233 = vld [vmem:[%s209 + $0xb8] sm:$0xff]
  %v234 = vld [vmem:[%s209 + $0xc0] sm:$0xff]
  %v235 = vld [vmem:[%s209 + $0xc8] sm:$0xff]
  %v236 = vld [vmem:[%s209 + $0xd0] sm:$0xff]
  %v237 = vld [vmem:[%s209 + $0xd8] sm:$0xff]
  %v238 = vld [vmem:[%s209 + $0xe0] sm:$0xff]
  %v239 = vld [vmem:[%s209 + $0xe8] sm:$0xff]
  %v240 = vld [vmem:[%s209 + $0xf0] sm:$0xff]
  %v241 = vld [vmem:[%s209 + $0xf8] sm:$0xff]
  %v242 = vld [vmem:[%s209 + $0x100] sm:$0xff]
  %v243 = vld [vmem:[%s209 + $0x108] sm:$0xff]
  %v244 = vld [vmem:[%s209 + $0x110] sm:$0xff]
  %v245 = vld [vmem:[%s209 + $0x118] sm:$0xff]
  %v246 = vld [vmem:[%s209 + $0x120] sm:$0xff]
  %v247 = vld [vmem:[%s209 + $0x128] sm:$0xff]
  %v248 = vld [vmem:[%s209 + $0x130] sm:$0xff]
  %v249 = vld [vmem:[%s209 + $0x138] sm:$0xff]
  %v250 = vld [vmem:[%s209 + $0x140] sm:$0xff]
  %v251 = vld [vmem:[%s209 + $0x148] sm:$0xff]
  %v252 = vld [vmem:[%s209 + $0x150] sm:$0xff]
  %v253 = vld [vmem:[%s209 + $0x158] sm:$0xff]
  %v254 = vld [vmem:[%s209 + $0x160] sm:$0xff]
  %v255 = vld [vmem:[%s209 + $0x168] sm:$0xff]
  %v256 = vld [vmem:[%s209 + $0x170] sm:$0xff]
  %v257 = vld [vmem:[%s209 + $0x178] sm:$0xff]
  %v258 = vld [vmem:[%s209 + $0x180] sm:$0xff]
  %v259 = vld [vmem:[%s209 + $0x188] sm:$0xff]
  %260 = vmatpush.msra.mxu0 %v225
  %261 = vmatpush.msra.mxu0 %v224
  %262 = vmatpush.msra.mxu0 %v223
  %263 = vmatpush.msra.mxu0 %v222
  %264 = vmatpush.msra.mxu0 %v221
  %265 = vmatpush.msra.mxu0 %v220
  %266 = vmatpush.msra.mxu0 %v219
  %267 = vmatpush.msra.mxu0 %v218
  %268 = vmatpush.msra.mxu0 %v217
  %269 = vmatpush.msra.mxu0 %v216
  %270 = vmatpush.msra.mxu0 %v215
  %271 = vmatpush.msra.mxu0 %v214
  %272 = vmatpush.msra.mxu0 %v213
  %273 = vmatpush.msra.mxu0 %v212
  %274 = vmatpush.msra.mxu0 %v211
  %275 = vmatpush.msra.mxu0 %v210
  %276 = vmatmul.f32.gmra.mxu0 %v14
  %v277 = vpop.f32.mrf.mxu0
  %v278 = vadd.f32 0.0, %v277
  %279 = vmatmul.f32.gmra.mxu0 %v18
  %v280 = vpop.f32.mrf.mxu0
  %v281 = vadd.f32 0.0, %v280
  %282 = vmatmul.f32.gmra.mxu0 %v22
  %v283 = vpop.f32.mrf.mxu0
  %v284 = vadd.f32 0.0, %v283
  %285 = vmatmul.f32.gmra.mxu0 %v26
  %v286 = vpop.f32.mrf.mxu0
  %v287 = vadd.f32 0.0, %v286
  %288 = vdwg.mxu0
  %289 = vmatpush.msra.mxu0 %v241
  %290 = vmatpush.msra.mxu0 %v240
  %291 = vmatpush.msra.mxu0 %v239
  %292 = vmatpush.msra.mxu0 %v238
  %293 = vmatpush.msra.mxu0 %v237
  %294 = vmatpush.msra.mxu0 %v236
  %295 = vmatpush.msra.mxu0 %v235
  %296 = vmatpush.msra.mxu0 %v234
  %297 = vmatpush.msra.mxu0 %v233
  %298 = vmatpush.msra.mxu0 %v232
  %299 = vmatpush.msra.mxu0 %v231
  %300 = vmatpush.msra.mxu0 %v230
  %301 = vmatpush.msra.mxu0 %v229
  %302 = vmatpush.msra.mxu0 %v228
  %303 = vmatpush.msra.mxu0 %v227
  %304 = vmatpush.msra.mxu0 %v226
  %305 = vmatmul.f32.gmra.mxu0 %v15
  %v306 = vpop.f32.mrf.mxu0
  %v307 = vadd.f32 %v278, %v306
  %308 = vmatmul.f32.gmra.mxu0 %v19
  %v309 = vpop.f32.mrf.mxu0
  %v310 = vadd.f32 %v281, %v309
  %311 = vmatmul.f32.gmra.mxu0 %v23
  %v312 = vpop.f32.mrf.mxu0
  %v313 = vadd.f32 %v284, %v312
  %314 = vmatmul.f32.gmra.mxu0 %v27
  %v315 = vpop.f32.mrf.mxu0
  %v316 = vadd.f32 %v287, %v315
  %317 = vdwg.mxu0
  %318 = vmatpush.msra.mxu0 %v257
  %319 = vmatpush.msra.mxu0 %v256
  %320 = vmatpush.msra.mxu0 %v255
  %321 = vmatpush.msra.mxu0 %v254
  %322 = vmatpush.msra.mxu0 %v253
  %323 = vmatpush.msra.mxu0 %v252
  %324 = vmatpush.msra.mxu0 %v251
  %325 = vmatpush.msra.mxu0 %v250
  %326 = vmatpush.msra.mxu0 %v249
  %327 = vmatpush.msra.mxu0 %v248
  %328 = vmatpush.msra.mxu0 %v247
  %329 = vmatpush.msra.mxu0 %v246
  %330 = vmatpush.msra.mxu0 %v245
  %331 = vmatpush.msra.mxu0 %v244
  %332 = vmatpush.msra.mxu0 %v243
  %333 = vmatpush.msra.mxu0 %v242
  %334 = vmatmul.f32.gmra.mxu0 %v16
  %v335 = vpop.f32.mrf.mxu0
  %v336 = vadd.f32 %v307, %v335
  %337 = vmatmul.f32.gmra.mxu0 %v20
  %v338 = vpop.f32.mrf.mxu0
  %v339 = vadd.f32 %v310, %v338
  %340 = vmatmul.f32.gmra.mxu0 %v24
  %v341 = vpop.f32.mrf.mxu0
  %v342 = vadd.f32 %v313, %v341
  %343 = vmatmul.f32.gmra.mxu0 %v28
  %v344 = vpop.f32.mrf.mxu0
  %v345 = vadd.f32 %v316, %v344
  %346 = vdwg.mxu0
  %347 = vmatpush.msra.mxu0 0.0
  %348 = vmatpush.msra.mxu0 0.0
  %349 = vmatpush.msra.mxu0 0.0
  %350 = vmatpush.msra.mxu0 0.0
  %351 = vmatpush.msra.mxu0 0.0
  %352 = vmatpush.msra.mxu0 0.0
  %353 = vmatpush.msra.mxu0 0.0
  %354 = vmatpush.msra.mxu0 0.0
  %355 = vmatpush.msra.mxu0 0.0
  %356 = vmatpush.msra.mxu0 0.0
  %357 = vmatpush.msra.mxu0 0.0
  %358 = vmatpush.msra.mxu0 0.0
  %359 = vmatpush.msra.mxu0 0.0
  %360 = vmatpush.msra.mxu0 0.0
  %361 = vmatpush.msra.mxu0 %v259
  %362 = vmatpush.msra.mxu0 %v258
  %363 = vmatmul.f32.gmra.mxu0 %v82
  %v364 = vpop.f32.mrf.mxu0
  %v365 = vadd.f32 %v336, %v364
  %366 = vmatmul.f32.gmra.mxu0 %v85
  %v367 = vpop.f32.mrf.mxu0
  %v368 = vadd.f32 %v339, %v367
  %369 = vmatmul.f32.gmra.mxu0 %v88
  %v370 = vpop.f32.mrf.mxu0
  %v371 = vadd.f32 %v342, %v370
  %372 = vmatmul.f32.gmra.mxu0 %v91
  %v373 = vpop.f32.mrf.mxu0
  %v374 = vadd.f32 %v345, %v373
  %375 = vdwg.mxu0
  %v376 = vmax.f32 %v198, %v365
  %v377 = vmax.f32 %v201, %v368
  %v378 = vmax.f32 %v204, %v371
  %v379 = vmax.f32 %v207, %v374
  %s380 = scalar_lea.vmem %s0, 800
  %v381 = vld [vmem:[%s380] sm:$0xff]
  %v382 = vld [vmem:[%s380 + $0x8] sm:$0xff]
  %v383 = vld [vmem:[%s380 + $0x10] sm:$0xff]
  %v384 = vld [vmem:[%s380 + $0x18] sm:$0xff]
  %v385 = vld [vmem:[%s380 + $0x20] sm:$0xff]
  %v386 = vld [vmem:[%s380 + $0x28] sm:$0xff]
  %v387 = vld [vmem:[%s380 + $0x30] sm:$0xff]
  %v388 = vld [vmem:[%s380 + $0x38] sm:$0xff]
  %v389 = vld [vmem:[%s380 + $0x40] sm:$0xff]
  %v390 = vld [vmem:[%s380 + $0x48] sm:$0xff]
  %v391 = vld [vmem:[%s380 + $0x50] sm:$0xff]
  %v392 = vld [vmem:[%s380 + $0x58] sm:$0xff]
  %v393 = vld [vmem:[%s380 + $0x60] sm:$0xff]
  %v394 = vld [vmem:[%s380 + $0x68] sm:$0xff]
  %v395 = vld [vmem:[%s380 + $0x70] sm:$0xff]
  %v396 = vld [vmem:[%s380 + $0x78] sm:$0xff]
  %v397 = vld [vmem:[%s380 + $0x80] sm:$0xff]
  %v398 = vld [vmem:[%s380 + $0x88] sm:$0xff]
  %v399 = vld [vmem:[%s380 + $0x90] sm:$0xff]
  %v400 = vld [vmem:[%s380 + $0x98] sm:$0xff]
  %v401 = vld [vmem:[%s380 + $0xa0] sm:$0xff]
  %v402 = vld [vmem:[%s380 + $0xa8] sm:$0xff]
  %v403 = vld [vmem:[%s380 + $0xb0] sm:$0xff]
  %v404 = vld [vmem:[%s380 + $0xb8] sm:$0xff]
  %v405 = vld [vmem:[%s380 + $0xc0] sm:$0xff]
  %v406 = vld [vmem:[%s380 + $0xc8] sm:$0xff]
  %v407 = vld [vmem:[%s380 + $0xd0] sm:$0xff]
  %v408 = vld [vmem:[%s380 + $0xd8] sm:$0xff]
  %v409 = vld [vmem:[%s380 + $0xe0] sm:$0xff]
  %v410 = vld [vmem:[%s380 + $0xe8] sm:$0xff]
  %v411 = vld [vmem:[%s380 + $0xf0] sm:$0xff]
  %v412 = vld [vmem:[%s380 + $0xf8] sm:$0xff]
  %v413 = vld [vmem:[%s380 + $0x100] sm:$0xff]
  %v414 = vld [vmem:[%s380 + $0x108] sm:$0xff]
  %v415 = vld [vmem:[%s380 + $0x110] sm:$0xff]
  %v416 = vld [vmem:[%s380 + $0x118] sm:$0xff]
  %v417 = vld [vmem:[%s380 + $0x120] sm:$0xff]
  %v418 = vld [vmem:[%s380 + $0x128] sm:$0xff]
  %v419 = vld [vmem:[%s380 + $0x130] sm:$0xff]
  %v420 = vld [vmem:[%s380 + $0x138] sm:$0xff]
  %v421 = vld [vmem:[%s380 + $0x140] sm:$0xff]
  %v422 = vld [vmem:[%s380 + $0x148] sm:$0xff]
  %v423 = vld [vmem:[%s380 + $0x150] sm:$0xff]
  %v424 = vld [vmem:[%s380 + $0x158] sm:$0xff]
  %v425 = vld [vmem:[%s380 + $0x160] sm:$0xff]
  %v426 = vld [vmem:[%s380 + $0x168] sm:$0xff]
  %v427 = vld [vmem:[%s380 + $0x170] sm:$0xff]
  %v428 = vld [vmem:[%s380 + $0x178] sm:$0xff]
  %v429 = vld [vmem:[%s380 + $0x180] sm:$0xff]
  %v430 = vld [vmem:[%s380 + $0x188] sm:$0xff]
  %431 = vmatpush.msra.mxu0 %v396
  %432 = vmatpush.msra.mxu0 %v395
  %433 = vmatpush.msra.mxu0 %v394
  %434 = vmatpush.msra.mxu0 %v393
  %435 = vmatpush.msra.mxu0 %v392
  %436 = vmatpush.msra.mxu0 %v391
  %437 = vmatpush.msra.mxu0 %v390
  %438 = vmatpush.msra.mxu0 %v389
  %439 = vmatpush.msra.mxu0 %v388
  %440 = vmatpush.msra.mxu0 %v387
  %441 = vmatpush.msra.mxu0 %v386
  %442 = vmatpush.msra.mxu0 %v385
  %443 = vmatpush.msra.mxu0 %v384
  %444 = vmatpush.msra.mxu0 %v383
  %445 = vmatpush.msra.mxu0 %v382
  %446 = vmatpush.msra.mxu0 %v381
  %447 = vmatmul.f32.gmra.mxu0 %v14
  %v448 = vpop.f32.mrf.mxu0
  %v449 = vadd.f32 0.0, %v448
  %450 = vmatmul.f32.gmra.mxu0 %v18
  %v451 = vpop.f32.mrf.mxu0
  %v452 = vadd.f32 0.0, %v451
  %453 = vmatmul.f32.gmra.mxu0 %v22
  %v454 = vpop.f32.mrf.mxu0
  %v455 = vadd.f32 0.0, %v454
  %456 = vmatmul.f32.gmra.mxu0 %v26
  %v457 = vpop.f32.mrf.mxu0
  %v458 = vadd.f32 0.0, %v457
  %459 = vdwg.mxu0
  %460 = vmatpush.msra.mxu0 %v412
  %461 = vmatpush.msra.mxu0 %v411
  %462 = vmatpush.msra.mxu0 %v410
  %463 = vmatpush.msra.mxu0 %v409
  %464 = vmatpush.msra.mxu0 %v408
  %465 = vmatpush.msra.mxu0 %v407
  %466 = vmatpush.msra.mxu0 %v406
  %467 = vmatpush.msra.mxu0 %v405
  %468 = vmatpush.msra.mxu0 %v404
  %469 = vmatpush.msra.mxu0 %v403
  %470 = vmatpush.msra.mxu0 %v402
  %471 = vmatpush.msra.mxu0 %v401
  %472 = vmatpush.msra.mxu0 %v400
  %473 = vmatpush.msra.mxu0 %v399
  %474 = vmatpush.msra.mxu0 %v398
  %475 = vmatpush.msra.mxu0 %v397
  %476 = vmatmul.f32.gmra.mxu0 %v15
  %v477 = vpop.f32.mrf.mxu0
  %v478 = vadd.f32 %v449, %v477
  %479 = vmatmul.f32.gmra.mxu0 %v19
  %v480 = vpop.f32.mrf.mxu0
  %v481 = vadd.f32 %v452, %v480
  %482 = vmatmul.f32.gmra.mxu0 %v23
  %v483 = vpop.f32.mrf.mxu0
  %v484 = vadd.f32 %v455, %v483
  %485 = vmatmul.f32.gmra.mxu0 %v27
  %v486 = vpop.f32.mrf.mxu0
  %v487 = vadd.f32 %v458, %v486
  %488 = vdwg.mxu0
  %489 = vmatpush.msra.mxu0 %v428
  %490 = vmatpush.msra.mxu0 %v427
  %491 = vmatpush.msra.mxu0 %v426
  %492 = vmatpush.msra.mxu0 %v425
  %493 = vmatpush.msra.mxu0 %v424
  %494 = vmatpush.msra.mxu0 %v423
  %495 = vmatpush.msra.mxu0 %v422
  %496 = vmatpush.msra.mxu0 %v421
  %497 = vmatpush.msra.mxu0 %v420
  %498 = vmatpush.msra.mxu0 %v419
  %499 = vmatpush.msra.mxu0 %v418
  %500 = vmatpush.msra.mxu0 %v417
  %501 = vmatpush.msra.mxu0 %v416
  %502 = vmatpush.msra.mxu0 %v415
  %503 = vmatpush.msra.mxu0 %v414
  %504 = vmatpush.msra.mxu0 %v413
  %505 = vmatmul.f32.gmra.mxu0 %v16
  %v506 = vpop.f32.mrf.mxu0
  %v507 = vadd.f32 %v478, %v506
  %508 = vmatmul.f32.gmra.mxu0 %v20
  %v509 = vpop.f32.mrf.mxu0
  %v510 = vadd.f32 %v481, %v509
  %511 = vmatmul.f32.gmra.mxu0 %v24
  %v512 = vpop.f32.mrf.mxu0
  %v513 = vadd.f32 %v484, %v512
  %514 = vmatmul.f32.gmra.mxu0 %v28
  %v515 = vpop.f32.mrf.mxu0
  %v516 = vadd.f32 %v487, %v515
  %517 = vdwg.mxu0
  %518 = vmatpush.msra.mxu0 0.0
  %519 = vmatpush.msra.mxu0 0.0
  %520 = vmatpush.msra.mxu0 0.0
  %521 = vmatpush.msra.mxu0 0.0
  %522 = vmatpush.msra.mxu0 0.0
  %523 = vmatpush.msra.mxu0 0.0
  %524 = vmatpush.msra.mxu0 0.0
  %525 = vmatpush.msra.mxu0 0.0
  %526 = vmatpush.msra.mxu0 0.0
  %527 = vmatpush.msra.mxu0 0.0
  %528 = vmatpush.msra.mxu0 0.0
  %529 = vmatpush.msra.mxu0 0.0
  %530 = vmatpush.msra.mxu0 0.0
  %531 = vmatpush.msra.mxu0 0.0
  %532 = vmatpush.msra.mxu0 %v430
  %533 = vmatpush.msra.mxu0 %v429
  %534 = vmatmul.f32.gmra.mxu0 %v82
  %v535 = vpop.f32.mrf.mxu0
  %v536 = vadd.f32 %v507, %v535
  %537 = vmatmul.f32.gmra.mxu0 %v85
  %v538 = vpop.f32.mrf.mxu0
  %v539 = vadd.f32 %v510, %v538
  %540 = vmatmul.f32.gmra.mxu0 %v88
  %v541 = vpop.f32.mrf.mxu0
  %v542 = vadd.f32 %v513, %v541
  %543 = vmatmul.f32.gmra.mxu0 %v91
  %v544 = vpop.f32.mrf.mxu0
  %v545 = vadd.f32 %v516, %v544
  %546 = vdwg.mxu0
  %v547 = vmax.f32 %v376, %v536
  %v548 = vmax.f32 %v377, %v539
  %v549 = vmax.f32 %v378, %v542
  %v550 = vmax.f32 %v379, %v545
  %s551 = scalar_lea.vmem %s0, 1200
  %v552 = vld [vmem:[%s551] sm:$0xff]
  %v553 = vld [vmem:[%s551 + $0x8] sm:$0xff]
  %v554 = vld [vmem:[%s551 + $0x10] sm:$0xff]
  %v555 = vld [vmem:[%s551 + $0x18] sm:$0xff]
  %v556 = vld [vmem:[%s551 + $0x20] sm:$0xff]
  %v557 = vld [vmem:[%s551 + $0x28] sm:$0xff]
  %v558 = vld [vmem:[%s551 + $0x30] sm:$0xff]
  %v559 = vld [vmem:[%s551 + $0x38] sm:$0xff]
  %v560 = vld [vmem:[%s551 + $0x40] sm:$0xff]
  %v561 = vld [vmem:[%s551 + $0x48] sm:$0xff]
  %v562 = vld [vmem:[%s551 + $0x50] sm:$0xff]
  %v563 = vld [vmem:[%s551 + $0x58] sm:$0xff]
  %v564 = vld [vmem:[%s551 + $0x60] sm:$0xff]
  %v565 = vld [vmem:[%s551 + $0x68] sm:$0xff]
  %v566 = vld [vmem:[%s551 + $0x70] sm:$0xff]
  %v567 = vld [vmem:[%s551 + $0x78] sm:$0xff]
  %v568 = vld [vmem:[%s551 + $0x80] sm:$0xff]
  %v569 = vld [vmem:[%s551 + $0x88] sm:$0xff]
  %v570 = vld [vmem:[%s551 + $0x90] sm:$0xff]
  %v571 = vld [vmem:[%s551 + $0x98] sm:$0xff]
  %v572 = vld [vmem:[%s551 + $0xa0] sm:$0xff]
  %v573 = vld [vmem:[%s551 + $0xa8] sm:$0xff]
  %v574 = vld [vmem:[%s551 + $0xb0] sm:$0xff]
  %v575 = vld [vmem:[%s551 + $0xb8] sm:$0xff]
  %v576 = vld [vmem:[%s551 + $0xc0] sm:$0xff]
  %v577 = vld [vmem:[%s551 + $0xc8] sm:$0xff]
  %v578 = vld [vmem:[%s551 + $0xd0] sm:$0xff]
  %v579 = vld [vmem:[%s551 + $0xd8] sm:$0xff]
  %v580 = vld [vmem:[%s551 + $0xe0] sm:$0xff]
  %v581 = vld [vmem:[%s551 + $0xe8] sm:$0xff]
  %v582 = vld [vmem:[%s551 + $0xf0] sm:$0xff]
  %v583 = vld [vmem:[%s551 + $0xf8] sm:$0xff]
  %v584 = vld [vmem:[%s551 + $0x100] sm:$0xff]
  %v585 = vld [vmem:[%s551 + $0x108] sm:$0xff]
  %v586 = vld [vmem:[%s551 + $0x110] sm:$0xff]
  %v587 = vld [vmem:[%s551 + $0x118] sm:$0xff]
  %v588 = vld [vmem:[%s551 + $0x120] sm:$0xff]
  %v589 = vld [vmem:[%s551 + $0x128] sm:$0xff]
  %v590 = vld [vmem:[%s551 + $0x130] sm:$0xff]
  %v591 = vld [vmem:[%s551 + $0x138] sm:$0xff]
  %v592 = vld [vmem:[%s551 + $0x140] sm:$0xff]
  %v593 = vld [vmem:[%s551 + $0x148] sm:$0xff]
  %v594 = vld [vmem:[%s551 + $0x150] sm:$0xff]
  %v595 = vld [vmem:[%s551 + $0x158] sm:$0xff]
  %v596 = vld [vmem:[%s551 + $0x160] sm:$0xff]
  %v597 = vld [vmem:[%s551 + $0x168] sm:$0xff]
  %v598 = vld [vmem:[%s551 + $0x170] sm:$0xff]
  %v599 = vld [vmem:[%s551 + $0x178] sm:$0xff]
  %v600 = vld [vmem:[%s551 + $0x180] sm:$0xff]
  %v601 = vld [vmem:[%s551 + $0x188] sm:$0xff]
  %602 = vmatpush.msra.mxu0 %v567
  %603 = vmatpush.msra.mxu0 %v566
  %604 = vmatpush.msra.mxu0 %v565
  %605 = vmatpush.msra.mxu0 %v564
  %606 = vmatpush.msra.mxu0 %v563
  %607 = vmatpush.msra.mxu0 %v562
  %608 = vmatpush.msra.mxu0 %v561
  %609 = vmatpush.msra.mxu0 %v560
  %610 = vmatpush.msra.mxu0 %v559
  %611 = vmatpush.msra.mxu0 %v558
  %612 = vmatpush.msra.mxu0 %v557
  %613 = vmatpush.msra.mxu0 %v556
  %614 = vmatpush.msra.mxu0 %v555
  %615 = vmatpush.msra.mxu0 %v554
  %616 = vmatpush.msra.mxu0 %v553
  %617 = vmatpush.msra.mxu0 %v552
  %618 = vmatmul.f32.gmra.mxu0 %v14
  %v619 = vpop.f32.mrf.mxu0
  %v620 = vadd.f32 0.0, %v619
  %621 = vmatmul.f32.gmra.mxu0 %v18
  %v622 = vpop.f32.mrf.mxu0
  %v623 = vadd.f32 0.0, %v622
  %624 = vmatmul.f32.gmra.mxu0 %v22
  %v625 = vpop.f32.mrf.mxu0
  %v626 = vadd.f32 0.0, %v625
  %627 = vmatmul.f32.gmra.mxu0 %v26
  %v628 = vpop.f32.mrf.mxu0
  %v629 = vadd.f32 0.0, %v628
  %630 = vdwg.mxu0
  %631 = vmatpush.msra.mxu0 %v583
  %632 = vmatpush.msra.mxu0 %v582
  %633 = vmatpush.msra.mxu0 %v581
  %634 = vmatpush.msra.mxu0 %v580
  %635 = vmatpush.msra.mxu0 %v579
  %636 = vmatpush.msra.mxu0 %v578
  %637 = vmatpush.msra.mxu0 %v577
  %638 = vmatpush.msra.mxu0 %v576
  %639 = vmatpush.msra.mxu0 %v575
  %640 = vmatpush.msra.mxu0 %v574
  %641 = vmatpush.msra.mxu0 %v573
  %642 = vmatpush.msra.mxu0 %v572
  %643 = vmatpush.msra.mxu0 %v571
  %644 = vmatpush.msra.mxu0 %v570
  %645 = vmatpush.msra.mxu0 %v569
  %646 = vmatpush.msra.mxu0 %v568
  %647 = vmatmul.f32.gmra.mxu0 %v15
  %v648 = vpop.f32.mrf.mxu0
  %v649 = vadd.f32 %v620, %v648
  %650 = vmatmul.f32.gmra.mxu0 %v19
  %v651 = vpop.f32.mrf.mxu0
  %v652 = vadd.f32 %v623, %v651
  %653 = vmatmul.f32.gmra.mxu0 %v23
  %v654 = vpop.f32.mrf.mxu0
  %v655 = vadd.f32 %v626, %v654
  %656 = vmatmul.f32.gmra.mxu0 %v27
  %v657 = vpop.f32.mrf.mxu0
  %v658 = vadd.f32 %v629, %v657
  %659 = vdwg.mxu0
  %660 = vmatpush.msra.mxu0 %v599
  %661 = vmatpush.msra.mxu0 %v598
  %662 = vmatpush.msra.mxu0 %v597
  %663 = vmatpush.msra.mxu0 %v596
  %664 = vmatpush.msra.mxu0 %v595
  %665 = vmatpush.msra.mxu0 %v594
  %666 = vmatpush.msra.mxu0 %v593
  %667 = vmatpush.msra.mxu0 %v592
  %668 = vmatpush.msra.mxu0 %v591
  %669 = vmatpush.msra.mxu0 %v590
  %670 = vmatpush.msra.mxu0 %v589
  %671 = vmatpush.msra.mxu0 %v588
  %672 = vmatpush.msra.mxu0 %v587
  %673 = vmatpush.msra.mxu0 %v586
  %674 = vmatpush.msra.mxu0 %v585
  %675 = vmatpush.msra.mxu0 %v584
  %676 = vmatmul.f32.gmra.mxu0 %v16
  %v677 = vpop.f32.mrf.mxu0
  %v678 = vadd.f32 %v649, %v677
  %679 = vmatmul.f32.gmra.mxu0 %v20
  %v680 = vpop.f32.mrf.mxu0
  %v681 = vadd.f32 %v652, %v680
  %682 = vmatmul.f32.gmra.mxu0 %v24
  %v683 = vpop.f32.mrf.mxu0
  %v684 = vadd.f32 %v655, %v683
  %685 = vmatmul.f32.gmra.mxu0 %v28
  %v686 = vpop.f32.mrf.mxu0
  %v687 = vadd.f32 %v658, %v686
  %688 = vdwg.mxu0
  %689 = vmatpush.msra.mxu0 0.0
  %690 = vmatpush.msra.mxu0 0.0
  %691 = vmatpush.msra.mxu0 0.0
  %692 = vmatpush.msra.mxu0 0.0
  %693 = vmatpush.msra.mxu0 0.0
  %694 = vmatpush.msra.mxu0 0.0
  %695 = vmatpush.msra.mxu0 0.0
  %696 = vmatpush.msra.mxu0 0.0
  %697 = vmatpush.msra.mxu0 0.0
  %698 = vmatpush.msra.mxu0 0.0
  %699 = vmatpush.msra.mxu0 0.0
  %700 = vmatpush.msra.mxu0 0.0
  %701 = vmatpush.msra.mxu0 0.0
  %702 = vmatpush.msra.mxu0 0.0
  %703 = vmatpush.msra.mxu0 %v601
  %704 = vmatpush.msra.mxu0 %v600
  %705 = vmatmul.f32.gmra.mxu0 %v82
  %v706 = vpop.f32.mrf.mxu0
  %v707 = vadd.f32 %v678, %v706
  %708 = vmatmul.f32.gmra.mxu0 %v85
  %v709 = vpop.f32.mrf.mxu0
  %v710 = vadd.f32 %v681, %v709
  %711 = vmatmul.f32.gmra.mxu0 %v88
  %v712 = vpop.f32.mrf.mxu0
  %v713 = vadd.f32 %v684, %v712
  %714 = vmatmul.f32.gmra.mxu0 %v91
  %v715 = vpop.f32.mrf.mxu0
  %v716 = vadd.f32 %v687, %v715
  %717 = vdwg.mxu0
  %v718 = vmax.f32 %v547, %v707
  %v719 = vmax.f32 %v548, %v710
  %v720 = vmax.f32 %v549, %v713
  %v721 = vmax.f32 %v550, %v716
  %v722 = vld [vmem:[%s2] sm:$0xff]
  %v723 = vld [vmem:[%s2 + $0x8] sm:$0xff]
  %v724 = vld [vmem:[%s2 + $0x10] sm:$0xff]
  %v725 = vld [vmem:[%s2 + $0x18] sm:$0xff]
  %727 = vset.pattern.permute.xlu0 0
  %728 = vperm.xlu0 %727, %v722
  %v729 = vpop.permute.xlu0 %728
  %732 = vset.pattern.permute.xlu0 0
  %733 = vperm.xlu0 %732, %v723
  %v734 = vpop.permute.xlu0 %733
  %737 = vset.pattern.permute.xlu0 0
  %738 = vperm.xlu0 %737, %v724
  %v739 = vpop.permute.xlu0 %738
  %742 = vset.pattern.permute.xlu0 0
  %743 = vperm.xlu0 %742, %v725
  %v744 = vpop.permute.xlu0 %743
  %v746 = vadd.f32 %v718, %v729
  %v747 = vadd.f32 %v719, %v734
  %v748 = vadd.f32 %v720, %v739
  %v749 = vadd.f32 %v721, %v744
  %v750 = vmax.f32 %v746, 0.0
  %v751 = vmax.f32 %v747, 0.0
  %v752 = vmax.f32 %v748, 0.0
  %v753 = vmax.f32 %v749, 0.0
  %vm754 = vcmask 408576
  %755 = vst.msk [vmem:[%s3] sm:$0xff] %vm754, %v750
  %756 = vst.msk [vmem:[%s3 + $0x8] sm:$0xff] %vm754, %v751
  %757 = vst.msk [vmem:[%s3 + $0x10] sm:$0xff] %vm754, %v752
  %758 = vst.msk [vmem:[%s3 + $0x18] sm:$0xff] %vm754, %v753
  // Predicated region
  $region14: #{lenet_forward.4} parent=0 // pred_check
    _
  $region15: #{lenet_forward.4} parent=0 // pred_check_branch
    %760 = sbr.rel (0) target = $region17
  $region16: #{lenet_forward.4} parent=0 // pred_region
    _
  $region17: #{lenet_forward.4} parent=0 // pred_fallthru
    _
  // Predicated region
  $region18: #{lenet_forward.4} parent=0 // pred_check
    _
  $region19: #{lenet_forward.4} parent=0 // pred_check_branch
    %762 = sbr.rel (0) target = $region21
  $region20: #{lenet_forward.4} parent=0 // pred_region
    _
  $region21: #{lenet_forward.4} parent=0 // pred_fallthru
    _

// kernel: lenet_forward.5
$region0: #{lenet_forward.5}
  #allocation0 [shape = 'u32[]', space=smem, size = 0x4, offset = 0x4, fixed_abs, tag = 'smem constant byte address 0x4 - core index']
  #allocation1 [shape = 'u32[72,128]{1,0:T(1,128)}', space=vmem, size = 0x9000, scoped, tag = 'internal scratch']
  %s0 = inlined_call_operand.vmem [shape: f32[2,800], index: 0, kind: input, shape index: {}]
  %s1 = inlined_call_operand.vmem [shape: f32[800,120], index: 1, kind: input, shape index: {}]
  %s2 = inlined_call_operand.vmem [shape: f32[1,120], index: 2, kind: input, shape index: {}]
  %s3 = inlined_call_operand.vmem [shape: f32[120,84], index: 3, kind: input, shape index: {}]
  %s4 = inlined_call_operand.vmem [shape: f32[1,84], index: 4, kind: input, shape index: {}]
  %s5 = inlined_call_operand.vmem [shape: f32[84,128], index: 5, kind: input, shape index: {}]
  %s6 = inlined_call_operand.vmem [shape: f32[1,128], index: 6, kind: input, shape index: {}]
  %s7 = inlined_call_operand.hbm [shape: f32[2,128], index: 7, kind: output, shape index: {}]
  %s8 = sld [smem:[#allocation0]]
  $region38: #{lenet_forward.5} parent=0
    _
  %s10 = ssub.s32 1, %s8
  %s11 = scalar_select 0, %s10, %s8
  $region1: #{lenet_forward.5} parent=0
    #allocation2 [shape = 'u8[1024]{0}', space=vmem, size = 0x400, scoped, tag = 'output window, operand 0, single buffered']
    #allocation3 [shape = 's32[1]{0}', space=sflag, size = 0x4, scoped, tag = 'scoped memory for lenet_forward.5']
    %12 = vsyncpa [#allocation3], 0
    // Predicated region
    $region2: #{lenet_forward.5} parent=1 // pred_check
      _
    $region3: #{lenet_forward.5} parent=1 // pred_check_branch
      %14 = sbr.rel (0) target = $region5
    $region4: #{lenet_forward.5} parent=1 // pred_region
      _
    $region5: #{lenet_forward.5} parent=1 // pred_fallthru
      _
    // Predicated region
    $region6: #{lenet_forward.5} parent=1 // pred_check
      _
    $region7: #{lenet_forward.5} parent=1 // pred_check_branch
      %16 = sbr.rel (0) target = $region9
    $region8: #{lenet_forward.5} parent=1 // pred_region
      _
    $region9: #{lenet_forward.5} parent=1 // pred_fallthru
      _
    // Predicated region
    $region10: #{lenet_forward.5} parent=1 // pred_check
      _
    $region11: #{lenet_forward.5} parent=1 // pred_check_branch
      %18 = sbr.rel (0) target = $region13
    $region12: #{lenet_forward.5} parent=1 // pred_region
      _
    $region13: #{lenet_forward.5} parent=1 // pred_fallthru
      _
    // Predicated region
    $region14: #{lenet_forward.5} parent=1 // pred_check
      _
    $region15: #{lenet_forward.5} parent=1 // pred_check_branch
      %20 = sbr.rel (0) target = $region17
    $region16: #{lenet_forward.5} parent=1 // pred_region
      _
    $region17: #{lenet_forward.5} parent=1 // pred_fallthru
      _
    // Predicated region
    $region18: #{lenet_forward.5} parent=1 // pred_check
      _
    $region19: #{lenet_forward.5} parent=1 // pred_check_branch
      %22 = sbr.rel (0) target = $region21
    $region20: #{lenet_forward.5} parent=1 // pred_region
      _
    $region21: #{lenet_forward.5} parent=1 // pred_fallthru
      _
    // Predicated region
    $region22: #{lenet_forward.5} parent=1 // pred_check
      _
    $region23: #{lenet_forward.5} parent=1 // pred_check_branch
      %24 = sbr.rel (0) target = $region25
    $region24: #{lenet_forward.5} parent=1 // pred_region
      _
    $region25: #{lenet_forward.5} parent=1 // pred_fallthru
      _
    // Predicated region
    $region26: #{lenet_forward.5} parent=1 // pred_check
      _
    $region27: #{lenet_forward.5} parent=1 // pred_check_branch
      %26 = sbr.rel (0) target = $region29
    $region28: #{lenet_forward.5} parent=1 // pred_region
      _
    $region29: #{lenet_forward.5} parent=1 // pred_fallthru
      _
    %v27 = vld [vmem:[%s0] sm:$0xff]
    %v28 = vld [vmem:[%s0 + $0x8] sm:$0x3f]
    %v29 = vld [vmem:[%s1] sm:$0xff]
    %v30 = vld [vmem:[%s1 + $0x8] sm:$0xff]
    %v31 = vld [vmem:[%s1 + $0x10] sm:$0xff]
    %v32 = vld [vmem:[%s1 + $0x18] sm:$0xff]
    %v33 = vld [vmem:[%s1 + $0x20] sm:$0xff]
    %v34 = vld [vmem:[%s1 + $0x28] sm:$0xff]
    %v35 = vld [vmem:[%s1 + $0x30] sm:$0xff]
    %v36 = vld [vmem:[%s1 + $0x38] sm:$0xff]
    %v37 = vld [vmem:[%s1 + $0x40] sm:$0xff]
    %v38 = vld [vmem:[%s1 + $0x48] sm:$0xff]
    %v39 = vld [vmem:[%s1 + $0x50] sm:$0xff]
    %v40 = vld [vmem:[%s1 + $0x58] sm:$0xff]
    %v41 = vld [vmem:[%s1 + $0x60] sm:$0xff]
    %v42 = vld [vmem:[%s1 + $0x68] sm:$0xff]
    %v43 = vld [vmem:[%s1 + $0x70] sm:$0xff]
    %v44 = vld [vmem:[%s1 + $0x78] sm:$0xff]
    %v45 = vld [vmem:[%s1 + $0x80] sm:$0xff]
    %v46 = vld [vmem:[%s1 + $0x88] sm:$0xff]
    %v47 = vld [vmem:[%s1 + $0x90] sm:$0xff]
    %v48 = vld [vmem:[%s1 + $0x98] sm:$0xff]
    %v49 = vld [vmem:[%s1 + $0xa0] sm:$0xff]
    %v50 = vld [vmem:[%s1 + $0xa8] sm:$0xff]
    %v51 = vld [vmem:[%s1 + $0xb0] sm:$0xff]
    %v52 = vld [vmem:[%s1 + $0xb8] sm:$0xff]
    %v53 = vld [vmem:[%s1 + $0xc0] sm:$0xff]
    %v54 = vld [vmem:[%s1 + $0xc8] sm:$0xff]
    %v55 = vld [vmem:[%s1 + $0xd0] sm:$0xff]
    %v56 = vld [vmem:[%s1 + $0xd8] sm:$0xff]
    %v57 = vld [vmem:[%s1 + $0xe0] sm:$0xff]
    %v58 = vld [vmem:[%s1 + $0xe8] sm:$0xff]
    %v59 = vld [vmem:[%s1 + $0xf0] sm:$0xff]
    %v60 = vld [vmem:[%s1 + $0xf8] sm:$0xff]
    %v61 = vld [vmem:[%s1 + $0x100] sm:$0xff]
    %v62 = vld [vmem:[%s1 + $0x108] sm:$0xff]
    %v63 = vld [vmem:[%s1 + $0x110] sm:$0xff]
    %v64 = vld [vmem:[%s1 + $0x118] sm:$0xff]
    %v65 = vld [vmem:[%s1 + $0x120] sm:$0xff]
    %v66 = vld [vmem:[%s1 + $0x128] sm:$0xff]
    %v67 = vld [vmem:[%s1 + $0x130] sm:$0xff]
    %v68 = vld [vmem:[%s1 + $0x138] sm:$0xff]
    %v69 = vld [vmem:[%s1 + $0x140] sm:$0xff]
    %v70 = vld [vmem:[%s1 + $0x148] sm:$0xff]
    %v71 = vld [vmem:[%s1 + $0x150] sm:$0xff]
    %v72 = vld [vmem:[%s1 + $0x158] sm:$0xff]
    %v73 = vld [vmem:[%s1 + $0x160] sm:$0xff]
    %v74 = vld [vmem:[%s1 + $0x168] sm:$0xff]
    %v75 = vld [vmem:[%s1 + $0x170] sm:$0xff]
    %v76 = vld [vmem:[%s1 + $0x178] sm:$0xff]
    %v77 = vld [vmem:[%s1 + $0x180] sm:$0xff]
    %v78 = vld [vmem:[%s1 + $0x188] sm:$0xff]
    %v79 = vld [vmem:[%s1 + $0x190] sm:$0xff]
    %v80 = vld [vmem:[%s1 + $0x198] sm:$0xff]
    %v81 = vld [vmem:[%s1 + $0x1a0] sm:$0xff]
    %v82 = vld [vmem:[%s1 + $0x1a8] sm:$0xff]
    %v83 = vld [vmem:[%s1 + $0x1b0] sm:$0xff]
    %v84 = vld [vmem:[%s1 + $0x1b8] sm:$0xff]
    %v85 = vld [vmem:[%s1 + $0x1c0] sm:$0xff]
    %v86 = vld [vmem:[%s1 + $0x1c8] sm:$0xff]
    %v87 = vld [vmem:[%s1 + $0x1d0] sm:$0xff]
    %v88 = vld [vmem:[%s1 + $0x1d8] sm:$0xff]
    %v89 = vld [vmem:[%s1 + $0x1e0] sm:$0xff]
    %v90 = vld [vmem:[%s1 + $0x1e8] sm:$0xff]
    %v91 = vld [vmem:[%s1 + $0x1f0] sm:$0xff]
    %v92 = vld [vmem:[%s1 + $0x1f8] sm:$0xff]
    %v93 = vld [vmem:[%s1 + $0x200] sm:$0xff]
    %v94 = vld [vmem:[%s1 + $0x208] sm:$0xff]
    %v95 = vld [vmem:[%s1 + $0x210] sm:$0xff]
    %v96 = vld [vmem:[%s1 + $0x218] sm:$0xff]
    %v97 = vld [vmem:[%s1 + $0x220] sm:$0xff]
    %v98 = vld [vmem:[%s1 + $0x228] sm:$0xff]
    %v99 = vld [vmem:[%s1 + $0x230] sm:$0xff]
    %v100 = vld [vmem:[%s1 + $0x238] sm:$0xff]
    %v101 = vld [vmem:[%s1 + $0x240] sm:$0xff]
    %v102 = vld [vmem:[%s1 + $0x248] sm:$0xff]
    %v103 = vld [vmem:[%s1 + $0x250] sm:$0xff]
    %v104 = vld [vmem:[%s1 + $0x258] sm:$0xff]
    %v105 = vld [vmem:[%s1 + $0x260] sm:$0xff]
    %v106 = vld [vmem:[%s1 + $0x268] sm:$0xff]
    %v107 = vld [vmem:[%s1 + $0x270] sm:$0xff]
    %v108 = vld [vmem:[%s1 + $0x278] sm:$0xff]
    %v109 = vld [vmem:[%s1 + $0x280] sm:$0xff]
    %v110 = vld [vmem:[%s1 + $0x288] sm:$0xff]
    %v111 = vld [vmem:[%s1 + $0x290] sm:$0xff]
    %v112 = vld [vmem:[%s1 + $0x298] sm:$0xff]
    %v113 = vld [vmem:[%s1 + $0x2a0] sm:$0xff]
    %v114 = vld [vmem:[%s1 + $0x2a8] sm:$0xff]
    %v115 = vld [vmem:[%s1 + $0x2b0] sm:$0xff]
    %v116 = vld [vmem:[%s1 + $0x2b8] sm:$0xff]
    %v117 = vld [vmem:[%s1 + $0x2c0] sm:$0xff]
    %v118 = vld [vmem:[%s1 + $0x2c8] sm:$0xff]
    %v119 = vld [vmem:[%s1 + $0x2d0] sm:$0xff]
    %v120 = vld [vmem:[%s1 + $0x2d8] sm:$0xff]
    %v121 = vld [vmem:[%s1 + $0x2e0] sm:$0xff]
    %v122 = vld [vmem:[%s1 + $0x2e8] sm:$0xff]
    %v123 = vld [vmem:[%s1 + $0x2f0] sm:$0xff]
    %v124 = vld [vmem:[%s1 + $0x2f8] sm:$0xff]
    %v125 = vld [vmem:[%s1 + $0x300] sm:$0xff]
    %v126 = vld [vmem:[%s1 + $0x308] sm:$0xff]
    %v127 = vld [vmem:[%s1 + $0x310] sm:$0xff]
    %v128 = vld [vmem:[%s1 + $0x318] sm:$0xff]
    %v129 = vld [vmem:[%s2] sm:$0x1]
    %v131 = vperm.slane %v129, 0
    %135 = vst [vmem:[#allocation1] ss:$4 sm:$0xff] %v27
    %s136 = scalar_lea.vmem [#allocation1], 32
    %137 = vst [vmem:[%s136] ss:$4 sm:$0xff] %v28
    %v138 = vld.sshfl [vmem:[#allocation1] sm:$0xff pattern:$0x73625140]
    %v139 = vld.sshfl [vmem:[#allocation1 + $0x8] sm:$0xff pattern:$0x73625140]
    %v140 = vld.sshfl [vmem:[#allocation1 + $0x10] sm:$0xff pattern:$0x73625140]
    %v141 = vld.sshfl [vmem:[#allocation1 + $0x18] sm:$0xff pattern:$0x73625140]
    %v142 = vld.sshfl [vmem:[#allocation1 + $0x20] sm:$0xff pattern:$0x73625140]
    %v143 = vld.sshfl [vmem:[#allocation1 + $0x28] sm:$0xff pattern:$0x73625140]
    %v144 = vld.sshfl [vmem:[#allocation1 + $0x30] sm:$0xff pattern:$0x73625140]
    %vm151 = vcmask 261120
    %v152 = vsel %vm151, %v144, 0
    %154 = vmatpush.msra.mxu0 %v44
    %155 = vmatpush.msra.mxu0 %v43
    %156 = vmatpush.msra.mxu0 %v42
    %157 = vmatpush.msra.mxu0 %v41
    %158 = vmatpush.msra.mxu0 %v40
    %159 = vmatpush.msra.mxu0 %v39
    %160 = vmatpush.msra.mxu0 %v38
    %161 = vmatpush.msra.mxu0 %v37
    %162 = vmatpush.msra.mxu0 %v36
    %163 = vmatpush.msra.mxu0 %v35
    %164 = vmatpush.msra.mxu0 %v34
    %165 = vmatpush.msra.mxu0 %v33
    %166 = vmatpush.msra.mxu0 %v32
    %167 = vmatpush.msra.mxu0 %v31
    %168 = vmatpush.msra.mxu0 %v30
    %169 = vmatpush.msra.mxu0 %v29
    %170 = vmatmul.f32.gmra.mxu0 %v138
    %v171 = vpop.f32.mrf.mxu0
    %v172 = vadd.f32 %v131, %v171
    %173 = vdwg.mxu0
    %174 = vmatpush.msra.mxu0 %v60
    %175 = vmatpush.msra.mxu0 %v59
    %176 = vmatpush.msra.mxu0 %v58
    %177 = vmatpush.msra.mxu0 %v57
    %178 = vmatpush.msra.mxu0 %v56
    %179 = vmatpush.msra.mxu0 %v55
    %180 = vmatpush.msra.mxu0 %v54
    %181 = vmatpush.msra.mxu0 %v53
    %182 = vmatpush.msra.mxu0 %v52
    %183 = vmatpush.msra.mxu0 %v51
    %184 = vmatpush.msra.mxu0 %v50
    %185 = vmatpush.msra.mxu0 %v49
    %186 = vmatpush.msra.mxu0 %v48
    %187 = vmatpush.msra.mxu0 %v47
    %188 = vmatpush.msra.mxu0 %v46
    %189 = vmatpush.msra.mxu0 %v45
    %190 = vmatmul.f32.gmra.mxu0 %v139
    %v191 = vpop.f32.mrf.mxu0
    %v192 = vadd.f32 %v172, %v191
    %193 = vdwg.mxu0
    %194 = vmatpush.msra.mxu0 %v76
    %195 = vmatpush.msra.mxu0 %v75
    %196 = vmatpush.msra.mxu0 %v74
    %197 = vmatpush.msra.mxu0 %v73
    %198 = vmatpush.msra.mxu0 %v72
    %199 = vmatpush.msra.mxu0 %v71
    %200 = vmatpush.msra.mxu0 %v70
    %201 = vmatpush.msra.mxu0 %v69
    %202 = vmatpush.msra.mxu0 %v68
    %203 = vmatpush.msra.mxu0 %v67
    %204 = vmatpush.msra.mxu0 %v66
    %205 = vmatpush.msra.mxu0 %v65
    %206 = vmatpush.msra.mxu0 %v64
    %207 = vmatpush.msra.mxu0 %v63
    %208 = vmatpush.msra.mxu0 %v62
    %209 = vmatpush.msra.mxu0 %v61
    %210 = vmatmul.f32.gmra.mxu0 %v140
    %v211 = vpop.f32.mrf.mxu0
    %v212 = vadd.f32 %v192, %v211
    %213 = vdwg.mxu0
    %214 = vmatpush.msra.mxu0 %v92
    %215 = vmatpush.msra.mxu0 %v91
    %216 = vmatpush.msra.mxu0 %v90
    %217 = vmatpush.msra.mxu0 %v89
    %218 = vmatpush.msra.mxu0 %v88
    %219 = vmatpush.msra.mxu0 %v87
    %220 = vmatpush.msra.mxu0 %v86
    %221 = vmatpush.msra.mxu0 %v85
    %222 = vmatpush.msra.mxu0 %v84
    %223 = vmatpush.msra.mxu0 %v83
    %224 = vmatpush.msra.mxu0 %v82
    %225 = vmatpush.msra.mxu0 %v81
    %226 = vmatpush.msra.mxu0 %v80
    %227 = vmatpush.msra.mxu0 %v79
    %228 = vmatpush.msra.mxu0 %v78
    %229 = vmatpush.msra.mxu0 %v77
    %230 = vmatmul.f32.gmra.mxu0 %v141
    %v231 = vpop.f32.mrf.mxu0
    %v232 = vadd.f32 %v212, %v231
    %233 = vdwg.mxu0
    %234 = vmatpush.msra.mxu0 %v108
    %235 = vmatpush.msra.mxu0 %v107
    %236 = vmatpush.msra.mxu0 %v106
    %237 = vmatpush.msra.mxu0 %v105
    %238 = vmatpush.msra.mxu0 %v104
    %239 = vmatpush.msra.mxu0 %v103
    %240 = vmatpush.msra.mxu0 %v102
    %241 = vmatpush.msra.mxu0 %v101
    %242 = vmatpush.msra.mxu0 %v100
    %243 = vmatpush.msra.mxu0 %v99
    %244 = vmatpush.msra.mxu0 %v98
    %245 = vmatpush.msra.mxu0 %v97
    %246 = vmatpush.msra.mxu0 %v96
    %247 = vmatpush.msra.mxu0 %v95
    %248 = vmatpush.msra.mxu0 %v94
    %249 = vmatpush.msra.mxu0 %v93
    %250 = vmatmul.f32.gmra.mxu0 %v142
    %v251 = vpop.f32.mrf.mxu0
    %v252 = vadd.f32 %v232, %v251
    %253 = vdwg.mxu0
    %254 = vmatpush.msra.mxu0 %v124
    %255 = vmatpush.msra.mxu0 %v123
    %256 = vmatpush.msra.mxu0 %v122
    %257 = vmatpush.msra.mxu0 %v121
    %258 = vmatpush.msra.mxu0 %v120
    %259 = vmatpush.msra.mxu0 %v119
    %260 = vmatpush.msra.mxu0 %v118
    %261 = vmatpush.msra.mxu0 %v117
    %262 = vmatpush.msra.mxu0 %v116
    %263 = vmatpush.msra.mxu0 %v115
    %264 = vmatpush.msra.mxu0 %v114
    %265 = vmatpush.msra.mxu0 %v113
    %266 = vmatpush.msra.mxu0 %v112
    %267 = vmatpush.msra.mxu0 %v111
    %268 = vmatpush.msra.mxu0 %v110
    %269 = vmatpush.msra.mxu0 %v109
    %270 = vmatmul.f32.gmra.mxu0 %v143
    %v271 = vpop.f32.mrf.mxu0
    %v272 = vadd.f32 %v252, %v271
    %273 = vdwg.mxu0
    %274 = vmatpush.msra.mxu0 0.0
    %275 = vmatpush.msra.mxu0 0.0
    %276 = vmatpush.msra.mxu0 0.0
    %277 = vmatpush.msra.mxu0 0.0
    %278 = vmatpush.msra.mxu0 0.0
    %279 = vmatpush.msra.mxu0 0.0
    %280 = vmatpush.msra.mxu0 0.0
    %281 = vmatpush.msra.mxu0 0.0
    %282 = vmatpush.msra.mxu0 0.0
    %283 = vmatpush.msra.mxu0 0.0
    %284 = vmatpush.msra.mxu0 0.0
    %285 = vmatpush.msra.mxu0 0.0
    %286 = vmatpush.msra.mxu0 %v128
    %287 = vmatpush.msra.mxu0 %v127
    %288 = vmatpush.msra.mxu0 %v126
    %289 = vmatpush.msra.mxu0 %v125
    %290 = vmatmul.f32.gmra.mxu0 %v152
    %v291 = vpop.f32.mrf.mxu0
    %v292 = vadd.f32 %v272, %v291
    %293 = vdwg.mxu0
    %v294 = vmax.f32 %v292, 0.0
    %v295 = vld [vmem:[%s3] sm:$0xff]
    %v296 = vld [vmem:[%s3 + $0x8] sm:$0xff]
    %v297 = vld [vmem:[%s3 + $0x10] sm:$0xff]
    %v298 = vld [vmem:[%s3 + $0x18] sm:$0xff]
    %v299 = vld [vmem:[%s3 + $0x20] sm:$0xff]
    %v300 = vld [vmem:[%s3 + $0x28] sm:$0xff]
    %v301 = vld [vmem:[%s3 + $0x30] sm:$0xff]
    %v302 = vld [vmem:[%s3 + $0x38] sm:$0xff]
    %v303 = vld [vmem:[%s3 + $0x40] sm:$0xff]
    %v304 = vld [vmem:[%s3 + $0x48] sm:$0xff]
    %v305 = vld [vmem:[%s3 + $0x50] sm:$0xff]
    %v306 = vld [vmem:[%s3 + $0x58] sm:$0xff]
    %v307 = vld [vmem:[%s3 + $0x60] sm:$0xff]
    %v308 = vld [vmem:[%s3 + $0x68] sm:$0xff]
    %v309 = vld [vmem:[%s3 + $0x70] sm:$0xff]
    %v310 = vld [vmem:[%s4] sm:$0x1]
    %v312 = vperm.slane %v310, 0
    %vm314 = vcmask 982016
    %v316 = vsel %vm314, %v294, 0
    %318 = vmatpush.msra.mxu0 0.0
    %319 = vmatpush.msra.mxu0 %v309
    %320 = vmatpush.msra.mxu0 %v308
    %321 = vmatpush.msra.mxu0 %v307
    %322 = vmatpush.msra.mxu0 %v306
    %323 = vmatpush.msra.mxu0 %v305
    %324 = vmatpush.msra.mxu0 %v304
    %325 = vmatpush.msra.mxu0 %v303
    %326 = vmatpush.msra.mxu0 %v302
    %327 = vmatpush.msra.mxu0 %v301
    %328 = vmatpush.msra.mxu0 %v300
    %329 = vmatpush.msra.mxu0 %v299
    %330 = vmatpush.msra.mxu0 %v298
    %331 = vmatpush.msra.mxu0 %v297
    %332 = vmatpush.msra.mxu0 %v296
    %333 = vmatpush.msra.mxu0 %v295
    %334 = vmatmul.f32.gmra.mxu0 %v316
    %v335 = vpop.f32.mrf.mxu0
    %v336 = vadd.f32 %v312, %v335
    %337 = vdwg.mxu0
    %v338 = vmax.f32 %v336, 0.0
    %v339 = vld [vmem:[%s5] sm:$0xff]
    %v340 = vld [vmem:[%s5 + $0x8] sm:$0xff]
    %v341 = vld [vmem:[%s5 + $0x10] sm:$0xff]
    %v342 = vld [vmem:[%s5 + $0x18] sm:$0xff]
    %v343 = vld [vmem:[%s5 + $0x20] sm:$0xff]
    %v344 = vld [vmem:[%s5 + $0x28] sm:$0xff]
    %v345 = vld [vmem:[%s5 + $0x30] sm:$0xff]
    %v346 = vld [vmem:[%s5 + $0x38] sm:$0xff]
    %v347 = vld [vmem:[%s5 + $0x40] sm:$0xff]
    %v348 = vld [vmem:[%s5 + $0x48] sm:$0xff]
    %v349 = vld [vmem:[%s5 + $0x50] sm:$0xf]
    %v350 = vld [vmem:[%s6] sm:$0x1]
    %v352 = vperm.slane %v350, 0
    %vm354 = vcmask 687104
    %v356 = vsel %vm354, %v338, 0
    %vm358 = vcmask 1043456
    %v360 = vsel %vm358, %v349, 0
    %362 = vmatpush.msra.mxu0 0.0
    %363 = vmatpush.msra.mxu0 0.0
    %364 = vmatpush.msra.mxu0 0.0
    %365 = vmatpush.msra.mxu0 0.0
    %366 = vmatpush.msra.mxu0 0.0
    %367 = vmatpush.msra.mxu0 %v360
    %368 = vmatpush.msra.mxu0 %v348
    %369 = vmatpush.msra.mxu0 %v347
    %370 = vmatpush.msra.mxu0 %v346
    %371 = vmatpush.msra.mxu0 %v345
    %372 = vmatpush.msra.mxu0 %v344
    %373 = vmatpush.msra.mxu0 %v343
    %374 = vmatpush.msra.mxu0 %v342
    %375 = vmatpush.msra.mxu0 %v341
    %376 = vmatpush.msra.mxu0 %v340
    %377 = vmatpush.msra.mxu0 %v339
    %378 = vmatmul.f32.gmra.mxu0 %v356
    %v379 = vpop.f32.mrf.mxu0
    %v380 = vadd.f32 %v352, %v379
    %381 = vdwg.mxu0
    %382 = vst [vmem:[#allocation2] sm:$0x3] %v380
    // Predicated region
    $region30: #{lenet_forward.5} parent=1 // pred_check
      _
    $region31: #{lenet_forward.5} parent=1 // pred_check_branch
      %384 = sbr.rel (0) target = $region33
    $region32: #{lenet_forward.5} parent=1 // pred_region
      %386 = vsyncadd [#allocation3], 0
      %s388 = sshll.u32 [#allocation2], 4
      %s389 = int_to_ptr.vmem [resolvable:$true] %s388
      %s390 = sshll.u32 %s7, 4
      %s391 = int_to_ptr.hbm [resolvable:$true] %s390
      %393 = dma.vmem_to_hbm [thread:$0]  %s389, 32, %s391, [#allocation3]
    $region33: #{lenet_forward.5} parent=1 // pred_fallthru
      _
    // Predicated region
    $region34: #{lenet_forward.5} parent=1 // pred_check
      _
    $region35: #{lenet_forward.5} parent=1 // pred_check_branch
      %395 = sbr.rel (0) target = $region37
    $region36: #{lenet_forward.5} parent=1 // pred_region
      %397 = dma.done [#allocation3], 32
    $region37: #{lenet_forward.5} parent=1 // pred_fallthru
      _
    %398 = vsyncpa [#allocation3], 1

</llo_original>
